<compile_context>
chip_gen: v7x
topology: tpu7x:2x2x1
jax: 0.10.0
libtpu: 0.0.40
codegen_flags: <defaults>
</compile_context>

<pallas_src>
import functools
import math

import jax
import jax.numpy as jnp
from jax import lax
from jax.experimental import pallas as pl
from jax.experimental.pallas import tpu as pltpu

_MIB = 1024 * 1024


def _round_up(x, m):
    return ((x + m - 1) // m) * m


def _vmem_capacity_bytes():
    """Physical VMEM per core; conservative 64 MiB fallback (v7x) if unknown."""
    try:
        info = pltpu.get_tpu_info()
        cap = getattr(info, "vmem_capacity_bytes", None)
        if cap:
            return int(cap)
    except Exception:
        pass
    return 64 * _MIB


def _softmax_rows(scores):
    # Exact division on purpose: attn is a returned, directly-compared output.
    # (pl.reciprocal(approx=True) caused the previous 2e-4 tolerance failure.)
    m = jnp.max(scores, axis=-1, keepdims=True)
    e = jnp.exp(scores - m)
    return e / jnp.sum(e, axis=-1, keepdims=True)


# ---------------------------------------------------------------------------
# Fused single-call kernel (small graphs: everything resident in VMEM)
# ---------------------------------------------------------------------------

def _fused_core(a_ref, x_ref, wqkv_ref, bqkv_ref, wo_ref, bo_ref, hb,
                attn_ref, out_ref, d_k, d_v):
    mm = a_ref.dtype
    ax = jnp.dot(a_ref[...], x_ref[...], preferred_element_type=jnp.float32)       # [N, F]
    qkv = jnp.dot(ax.astype(mm), wqkv_ref[...],
                  preferred_element_type=jnp.float32) + bqkv_ref[...]               # [N, Dt]
    q = qkv[:, :d_k].astype(mm)                       # scale already folded into Wq/bq
    k = qkv[:, d_k:2 * d_k].astype(mm)
    v = qkv[:, 2 * d_k:2 * d_k + d_v].astype(mm)
    scores = lax.dot_general(q, k, (((1,), (1,)), ((), ())),
                             preferred_element_type=jnp.float32)                    # [N, N]
    if hb is not None:
        scores = scores + hb.astype(jnp.float32)
    attn = _softmax_rows(scores)
    attn_ref[...] = attn.astype(attn_ref.dtype)
    ao = jnp.dot(attn.astype(mm), v, preferred_element_type=jnp.float32)            # [N, d_v]
    agg = jnp.dot(a_ref[...], ao.astype(mm), preferred_element_type=jnp.float32)    # [N, d_v]
    out = jnp.dot(agg.astype(wo_ref.dtype), wo_ref[...],
                  preferred_element_type=jnp.float32) + bo_ref[...]                 # [N, F]
    out_ref[...] = out.astype(out_ref.dtype)


def _fused_kernel(a_ref, x_ref, wqkv_ref, bqkv_ref, wo_ref, bo_ref,
                  attn_ref, out_ref, *, d_k, d_v):
    _fused_core(a_ref, x_ref, wqkv_ref, bqkv_ref, wo_ref, bo_ref, None,
                attn_ref, out_ref, d_k, d_v)


def _fused_bias_kernel(a_ref, x_ref, wqkv_ref, bqkv_ref, wo_ref, bo_ref, hb_ref,
                       attn_ref, out_ref, *, d_k, d_v):
    _fused_core(a_ref, x_ref, wqkv_ref, bqkv_ref, wo_ref, bo_ref, hb_ref[...],
                attn_ref, out_ref, d_k, d_v)


# ---------------------------------------------------------------------------
# Tiled kernels (large graphs: row-tiled grid, BlockSpec double-buffering)
# ---------------------------------------------------------------------------

def _proj_kernel(a_ref, x_ref, w_ref, b_ref, qkv_ref):
    """Fused GraphConv projections: (A_row @ X) @ [Wq|Wk|Wv] + b, one dense store."""
    ax = jnp.dot(a_ref[...], x_ref[...], preferred_element_type=jnp.float32)
    qkv = jnp.dot(ax.astype(w_ref.dtype), w_ref[...],
                  preferred_element_type=jnp.float32) + b_ref[...]
    qkv_ref[...] = qkv.astype(qkv_ref.dtype)


def _attn_core(qrow_ref, kv_ref, hb, attn_ref, ao_ref, d_k, d_v):
    qrow = qrow_ref[...]                              # [TQ, Dt]  (scale folded into Wq)
    kv = kv_ref[...]                                  # [N,  Dt]  resident
    q = qrow[:, :d_k]
    k = kv[:, d_k:2 * d_k]
    v = kv[:, 2 * d_k:2 * d_k + d_v]
    scores = lax.dot_general(q, k, (((1,), (1,)), ((), ())),
                             preferred_element_type=jnp.float32)                    # [TQ, N]
    if hb is not None:
        scores = scores + hb.astype(jnp.float32)
    attn = _softmax_rows(scores)
    attn_ref[...] = attn.astype(attn_ref.dtype)
    ao_ref[...] = jnp.dot(attn.astype(v.dtype), v,
                          preferred_element_type=jnp.float32).astype(ao_ref.dtype)


def _attn_kernel(qrow_ref, kv_ref, attn_ref, ao_ref, *, d_k, d_v):
    _attn_core(qrow_ref, kv_ref, None, attn_ref, ao_ref, d_k, d_v)


def _attn_bias_kernel(qrow_ref, kv_ref, hb_ref, attn_ref, ao_ref, *, d_k, d_v):
    _attn_core(qrow_ref, kv_ref, hb_ref[...], attn_ref, ao_ref, d_k, d_v)


def _out_kernel(a_ref, ao_ref, w_ref, b_ref, o_ref):
    """Output GraphConv for one row tile: (A_row @ attn_out) @ Wo + bo."""
    agg = jnp.dot(a_ref[...], ao_ref[...], preferred_element_type=jnp.float32)
    out = jnp.dot(agg.astype(w_ref.dtype), w_ref[...],
                  preferred_element_type=jnp.float32) + b_ref[...]
    o_ref[...] = out.astype(o_ref.dtype)


# ---------------------------------------------------------------------------
# Host wrapper
# ---------------------------------------------------------------------------

def self_attention_pallas(a_hat, x, params, d_k, h_attn=None, *,
                          matmul_dtype=jnp.float32, force_tiled=False,
                          max_tile=None):
    """a_hat: [N, N] normalized adjacency; x: [N, in_feats]; returns (out, attn)."""
    n, in_feats = x.shape
    wq, bq, wk, bk, wv, bv, wo, bo = params
    d_v = wv.shape[1]
    d_t = 2 * d_k + d_v
    scale = 1.0 / math.sqrt(float(d_k))

    mm = jnp.dtype(matmul_dtype)
    mm_bytes = mm.itemsize

    # Fold 1/sqrt(d_k) into Wq/bq (zero in-kernel work) and fuse Q|K|V weights
    # -> one MXU pass + one lane-dense store instead of three 16-wide ones.
    w_qkv = jnp.concatenate([wq * scale, wk, wv], axis=1).astype(mm)
    b_qkv = jnp.concatenate([bq * scale, bk, bv], axis=1).astype(jnp.float32)

    a_mm = a_hat.astype(mm)
    x_mm = x.astype(mm)
    wo_mm = wo.astype(mm)
    bo_f32 = bo.astype(jnp.float32)
    hb_mm = None if h_attn is None else h_attn.astype(mm)

    vmem_cap = _vmem_capacity_bytes()
    vmem_limit = int(min(vmem_cap * 0.6, 100 * _MIB))
    budget = int(vmem_limit * 0.75)

    # ------------- single fused call when the whole problem fits VMEM -------------
    fused_bytes = (n * n * mm_bytes * (2 if h_attn is not None else 1)   # A_hat (+h_attn)
                   + n * in_feats * (mm_bytes + 4)                        # X + out
                   + 4 * n * n * 4                                        # attn out + f32 temps
                   + n * d_t * 4
                   + 2 * in_feats * d_t * mm_bytes)
    if not force_tiled and fused_bytes <= budget:
        kern = functools.partial(
            _fused_kernel if h_attn is None else _fused_bias_kernel, d_k=d_k, d_v=d_v)
        args = [a_mm, x_mm, w_qkv, b_qkv, wo_mm, bo_f32]
        if h_attn is not None:
            args.append(hb_mm)
        attn, out = pl.pallas_call(
            kern,
            out_shape=(jax.ShapeDtypeStruct((n, n), jnp.float32),
                       jax.ShapeDtypeStruct((n, in_feats), jnp.float32)),
            compiler_params=pltpu.CompilerParams(vmem_limit_bytes=vmem_limit),
        )(*args)
        return out, attn

    # ------------- tiled path: three row-tiled calls over a padded row grid -------------
    if max_tile is None:
        max_tile = 512 if vmem_cap >= 96 * _MIB else 256   # v5e/v6e vs v7x
    max_tile = max(8, _round_up(min(max_tile, _round_up(n, 8)), 8))

    def _phase2_bytes(tq):
        resident = 2 * n * d_t * mm_bytes                       # K/V (double-buffered)
        per_tile = tq * d_t * mm_bytes + tq * n * 4 + tq * d_v * mm_bytes
        if h_attn is not None:
            per_tile += tq * n * mm_bytes
        temps = 3 * tq * n * 4                                   # scores / e / attn f32
        return resident + 2 * per_tile + temps

    tq = max_tile
    while tq > 8 and _phase2_bytes(tq) > budget:
        tq = max(8, _round_up(tq // 2, 8))

    n_pad = _round_up(n, tq)
    grid = (n_pad // tq,)

    def _pad_rows(arr):
        return arr if n_pad == n else jnp.pad(arr, ((0, n_pad - n), (0, 0)))

    a_pad = _pad_rows(a_mm)
    hb_pad = None if hb_mm is None else _pad_rows(hb_mm)

    tiled = lambda cols: pl.BlockSpec((tq, cols), lambda i: (i, 0))   # row-tile streams
    full = lambda r, c: pl.BlockSpec((r, c), lambda i: (0, 0))        # resident operands

    cparams = pltpu.CompilerParams(
        dimension_semantics=("parallel",),       # shard row tiles across TCs on v7x
        vmem_limit_bytes=vmem_limit,
    )

    # -------- Phase 1: fused GraphConv projections (single lane-dense QKV output) --------
    qkv_pad = pl.pallas_call(
        _proj_kernel,
        grid=grid,
        in_specs=[tiled(n), full(n, in_feats), full(in_feats, d_t), full(1, d_t)],
        out_specs=tiled(d_t),
        out_shape=jax.ShapeDtypeStruct((n_pad, d_t), mm),
        compiler_params=cparams,
    )(a_pad, x_mm, w_qkv, b_qkv)

    # K/V come only from the true rows -> padded rows can never act as keys/values.
    kv = qkv_pad[:n]

    # -------- Phase 2: row-tiled attention --------
    attn_out_shapes = (jax.ShapeDtypeStruct((n_pad, n), jnp.float32),   # attn (returned)
                       jax.ShapeDtypeStruct((n_pad, d_v), mm))          # attn @ V
    if hb_pad is None:
        attn_pad, ao_pad = pl.pallas_call(
            functools.partial(_attn_kernel, d_k=d_k, d_v=d_v),
            grid=grid,
            in_specs=[tiled(d_t), full(n, d_t)],
            out_specs=(tiled(n), tiled(d_v)),
            out_shape=attn_out_shapes,
            compiler_params=cparams,
        )(qkv_pad, kv)
    else:
        attn_pad, ao_pad = pl.pallas_call(
            functools.partial(_attn_bias_kernel, d_k=d_k, d_v=d_v),
            grid=grid,
            in_specs=[tiled(d_t), full(n, d_t), tiled(n)],
            out_specs=(tiled(n), tiled(d_v)),
            out_shape=attn_out_shapes,
            compiler_params=cparams,
        )(qkv_pad, kv, hb_pad)

    # -------- Phase 3: output GraphConv --------
    out_pad = pl.pallas_call(
        _out_kernel,
        grid=grid,
        in_specs=[tiled(n), full(n, d_v), full(d_v, in_feats), full(1, in_feats)],
        out_specs=tiled(in_feats),
        out_shape=jax.ShapeDtypeStruct((n_pad, in_feats), jnp.float32),
        compiler_params=cparams,
    )(a_pad, ao_pad[:n], wo_mm, bo_f32)

    return out_pad[:n], attn_pad[:n]


# ---------------------------------------------------------------------------
# Parameter / graph construction + pure-JAX reference
# ---------------------------------------------------------------------------

def make_params(key, in_feats, d_k, d_v):
    ks = jax.random.split(key, 4)

    def layer(k, fin, fout):
        kw, kb = jax.random.split(k)
        w = jax.random.normal(kw, (fin, fout), jnp.float32) * (1.0 / math.sqrt(fin))
        b = 0.1 * jax.random.normal(kb, (1, fout), jnp.float32)
        return w, b

    wq, bq = layer(ks[0], in_feats, d_k)
    wk, bk = layer(ks[1], in_feats, d_k)
    wv, bv = layer(ks[2], in_feats, d_v)
    wo, bo = layer(ks[3], d_v, in_feats)
    return (wq, bq, wk, bk, wv, bv, wo, bo)


def normalized_adjacency(adj):
    """A_hat = D^{-1/2} A D^{-1/2}  (DGL GraphConv norm='both')."""
    deg = jnp.sum(adj, axis=-1)
    dinv = jnp.where(deg > 0, 1.0 / jnp.sqrt(deg), 0.0)
    return adj * dinv[:, None] * dinv[None, :]


def reference_forward(a_hat, x, params, d_k, h_attn=None):
    wq, bq, wk, bk, wv, bv, wo, bo = params
    ax = a_hat @ x
    q = ax @ wq + bq
    k = ax @ wk + bk
    v = ax @ wv + bv
    scores = (q @ k.T) / math.sqrt(d_k)
    if h_attn is not None:
        scores = scores + h_attn
    attn = jax.nn.softmax(scores, axis=-1)
    attn_out = attn @ v
    out = (a_hat @ attn_out) @ wo + bo
    return out, attn


# ---------------------------------------------------------------------------
# Test
# ---------------------------------------------------------------------------

if __name__ == "__main__":
    # Keep the pure-JAX reference (and kernel dots) in true-f32 matmul precision so
    # the comparison is meaningful on real TPUs (default precision would be bf16).
    jax.config.update("jax_default_matmul_precision", "highest")

    key = jax.random.PRNGKey(0)

    def build_case(case_key, n, in_feats, d_k, d_v):
        k_feat, k_adj, k_par, k_bias = jax.random.split(case_key, 4)
        x = jax.random.normal(k_feat, (n, in_feats), jnp.float32)
        adj_logits = jax.random.uniform(k_adj, (n, n))
        adj = (adj_logits + adj_logits.T > 1.0).astype(jnp.float32)
        adj = jnp.maximum(adj, jnp.eye(n, dtype=jnp.float32))
        a_hat = normalized_adjacency(adj)
        params = make_params(k_par, in_feats, d_k, d_v)
        h_attn = 0.1 * jax.random.normal(k_bias, (n, n), jnp.float32)
        return a_hat, x, params, h_attn

    keys = jax.random.split(key, 3)
    IN_FEATS, D_K, D_V = 32, 16, 16

    # Case 1: module-sized toy graph (N=8), f32, no bias -> fused single-call path.
    N1 = 8
    a1, x1, p1, _ = build_case(keys[0], N1, IN_FEATS, D_K, D_V)
    out1, attn1 = self_attention_pallas(a1, x1, p1, D_K)
    jax.block_until_ready((out1, attn1))
    r_out1, r_attn1 = reference_forward(a1, x1, p1, D_K)
    assert out1.shape == (N1, IN_FEATS) and attn1.shape == (N1, N1)
    assert jnp.allclose(out1, r_out1, atol=5e-4, rtol=5e-4)
    assert jnp.allclose(attn1, r_attn1, atol=5e-4, rtol=5e-4)

    # Case 2: larger graph with h_attn additive bias, f32, fused path (default).
    N2 = 256
    a2, x2, p2, hb2 = build_case(keys[1], N2, IN_FEATS, D_K, D_V)
    r_out2, r_attn2 = reference_forward(a2, x2, p2, D_K, h_attn=hb2)

    out2, attn2 = self_attention_pallas(a2, x2, p2, D_K, h_attn=hb2)
    jax.block_until_ready((out2, attn2))
    assert jnp.allclose(out2, r_out2, atol=1e-3, rtol=1e-3)
    assert jnp.allclose(attn2, r_attn2, atol=1e-3, rtol=1e-3)

    # Case 3: same graph, force the 3-phase row-tiled path (grid of 2 row tiles).
    out3, attn3 = self_attention_pallas(a2, x2, p2, D_K, h_attn=hb2,
                                        force_tiled=True, max_tile=128)
    jax.block_until_ready((out3, attn3))
    assert jnp.allclose(out3, r_out2, atol=1e-3, rtol=1e-3)
    assert jnp.allclose(attn3, r_attn2, atol=1e-3, rtol=1e-3)

    # Case 4: awkward N (not a multiple of 8/128) -> row padding + slicing path.
    N4 = 200
    a4, x4, p4, hb4 = build_case(keys[2], N4, IN_FEATS, D_K, D_V)
    out4, attn4 = self_attention_pallas(a4, x4, p4, D_K, h_attn=hb4,
                                        force_tiled=True, max_tile=128)
    jax.block_until_ready((out4, attn4))
    r_out4, r_attn4 = reference_forward(a4, x4, p4, D_K, h_attn=hb4)
    assert out4.shape == (N4, IN_FEATS) and attn4.shape == (N4, N4)
    assert jnp.allclose(out4, r_out4, atol=1e-3, rtol=1e-3)
    assert jnp.allclose(attn4, r_attn4, atol=1e-3, rtol=1e-3)

    # Case 5: bf16 MXU inputs + bf16 intermediates (v6e/v7x fast path), loose tolerance.
    out5, attn5 = self_attention_pallas(a2, x2, p2, D_K, h_attn=hb2,
                                        matmul_dtype=jnp.bfloat16)
    jax.block_until_ready((out5, attn5))
    assert jnp.allclose(out5, r_out2, atol=1e-1, rtol=5e-2)
    assert jnp.allclose(attn5, r_attn2, atol=1e-1, rtol=5e-2)

    print("KERNEL_OK")
</pallas_src>

<mosaic_0001>
module attributes {stable_mosaic.version = 11 : i64} {
  func.func @_fused_kernel(%arg0: memref<8x8xf32, #tpu.memory_space<vmem>>, %arg1: memref<8x32xf32, #tpu.memory_space<vmem>>, %arg2: memref<32x48xf32, #tpu.memory_space<vmem>>, %arg3: memref<1x48xf32, #tpu.memory_space<vmem>>, %arg4: memref<16x32xf32, #tpu.memory_space<vmem>>, %arg5: memref<1x32xf32, #tpu.memory_space<vmem>>, %arg6: memref<8x8xf32, #tpu.memory_space<vmem>>, %arg7: memref<8x32xf32, #tpu.memory_space<vmem>>) attributes {dimension_semantics = [], scalar_prefetch = 0 : i64, scratch_operands = 0 : i64, tpu.core_type = #tpu.core_type<tc>} {
    %c0 = arith.constant 0 : index
    %c0_0 = arith.constant 0 : index
    %0 = vector.load %arg0[%c0, %c0_0] : memref<8x8xf32, #tpu.memory_space<vmem>>, vector<8x8xf32>
    %c0_1 = arith.constant 0 : index
    %c0_2 = arith.constant 0 : index
    %1 = vector.load %arg1[%c0_1, %c0_2] : memref<8x32xf32, #tpu.memory_space<vmem>>, vector<8x32xf32>
    %cst = arith.constant dense<0.000000e+00> : vector<8x32xf32>
    %2 = tpu.matmul %0, %1, %cst {dimension_numbers = #tpu.dot_dimension_numbers<[1], [0], [0], [1], [0, 0, 1, 1], [], []>, precision = #tpu.contract_precision<fp32>} : vector<8x8xf32>, vector<8x32xf32>, vector<8x32xf32> -> vector<8x32xf32>
    %c0_3 = arith.constant 0 : index
    %c0_4 = arith.constant 0 : index
    %3 = vector.load %arg2[%c0_3, %c0_4] : memref<32x48xf32, #tpu.memory_space<vmem>>, vector<32x48xf32>
    %cst_5 = arith.constant dense<0.000000e+00> : vector<8x48xf32>
    %4 = tpu.matmul %2, %3, %cst_5 {dimension_numbers = #tpu.dot_dimension_numbers<[1], [0], [0], [1], [0, 0, 1, 1], [], []>, precision = #tpu.contract_precision<fp32>} : vector<8x32xf32>, vector<32x48xf32>, vector<8x48xf32> -> vector<8x48xf32>
    %c0_6 = arith.constant 0 : index
    %c0_7 = arith.constant 0 : index
    %5 = vector.load %arg3[%c0_6, %c0_7] : memref<1x48xf32, #tpu.memory_space<vmem>>, vector<1x48xf32>
    %6 = vector.broadcast %5 : vector<1x48xf32> to vector<8x48xf32>
    %7 = arith.addf %4, %6 : vector<8x48xf32>
    %8 = vector.extract_strided_slice %7 {offsets = [0, 0], sizes = [8, 16], strides = [1, 1]} : vector<8x48xf32> to vector<8x16xf32>
    %9 = vector.extract_strided_slice %7 {offsets = [0, 16], sizes = [8, 16], strides = [1, 1]} : vector<8x48xf32> to vector<8x16xf32>
    %10 = vector.extract_strided_slice %7 {offsets = [0, 32], sizes = [8, 16], strides = [1, 1]} : vector<8x48xf32> to vector<8x16xf32>
    %cst_8 = arith.constant dense<0.000000e+00> : vector<8x8xf32>
    %11 = tpu.matmul %8, %9, %cst_8 {dimension_numbers = #tpu.dot_dimension_numbers<[1], [1], [0], [0], [0, 0, 1, 0], [], []>, precision = #tpu.contract_precision<fp32>} : vector<8x16xf32>, vector<8x16xf32>, vector<8x8xf32> -> vector<8x8xf32>
    %cst_9 = arith.constant dense<0xFF800000> : vector<8xf32>
    %12 = vector.multi_reduction <maximumf>, %11, %cst_9 [1] : vector<8x8xf32> to vector<8xf32>
    %13 = vector.shape_cast %12 : vector<8xf32> to vector<8x1xf32>
    %14 = vector.broadcast %13 : vector<8x1xf32> to vector<8x8xf32>
    %15 = arith.subf %11, %14 : vector<8x8xf32>
    %16 = math.exp %15 : vector<8x8xf32>
    %cst_10 = arith.constant dense<0.000000e+00> : vector<8xf32>
    %17 = vector.multi_reduction <add>, %16, %cst_10 [1] : vector<8x8xf32> to vector<8xf32>
    %18 = vector.shape_cast %17 : vector<8xf32> to vector<8x1xf32>
    %19 = vector.broadcast %18 : vector<8x1xf32> to vector<8x8xf32>
    %20 = arith.divf %16, %19 : vector<8x8xf32>
    %c0_11 = arith.constant 0 : index
    %c0_12 = arith.constant 0 : index
    %21 = vector.load %arg6[%c0_11, %c0_12] : memref<8x8xf32, #tpu.memory_space<vmem>>, vector<8x8xf32>
    tpu.vector_store %arg6[%c0_11, %c0_12], %20 {strides = array<i32>} : memref<8x8xf32, #tpu.memory_space<vmem>>, vector<8x8xf32>,
    %cst_13 = arith.constant dense<0.000000e+00> : vector<8x16xf32>
    %22 = tpu.matmul %20, %10, %cst_13 {dimension_numbers = #tpu.dot_dimension_numbers<[1], [0], [0], [1], [0, 0, 1, 1], [], []>, precision = #tpu.contract_precision<fp32>} : vector<8x8xf32>, vector<8x16xf32>, vector<8x16xf32> -> vector<8x16xf32>
    %c0_14 = arith.constant 0 : index
    %c0_15 = arith.constant 0 : index
    %23 = vector.load %arg0[%c0_14, %c0_15] : memref<8x8xf32, #tpu.memory_space<vmem>>, vector<8x8xf32>
    %cst_16 = arith.constant dense<0.000000e+00> : vector<8x16xf32>
    %24 = tpu.matmul %23, %22, %cst_16 {dimension_numbers = #tpu.dot_dimension_numbers<[1], [0], [0], [1], [0, 0, 1, 1], [], []>, precision = #tpu.contract_precision<fp32>} : vector<8x8xf32>, vector<8x16xf32>, vector<8x16xf32> -> vector<8x16xf32>
    %c0_17 = arith.constant 0 : index
    %c0_18 = arith.constant 0 : index
    %25 = vector.load %arg4[%c0_17, %c0_18] : memref<16x32xf32, #tpu.memory_space<vmem>>, vector<16x32xf32>
    %cst_19 = arith.constant dense<0.000000e+00> : vector<8x32xf32>
    %26 = tpu.matmul %24, %25, %cst_19 {dimension_numbers = #tpu.dot_dimension_numbers<[1], [0], [0], [1], [0, 0, 1, 1], [], []>, precision = #tpu.contract_precision<fp32>} : vector<8x16xf32>, vector<16x32xf32>, vector<8x32xf32> -> vector<8x32xf32>
    %c0_20 = arith.constant 0 : index
    %c0_21 = arith.constant 0 : index
    %27 = vector.load %arg5[%c0_20, %c0_21] : memref<1x32xf32, #tpu.memory_space<vmem>>, vector<1x32xf32>
    %28 = vector.broadcast %27 : vector<1x32xf32> to vector<8x32xf32>
    %29 = arith.addf %26, %28 : vector<8x32xf32>
    %c0_22 = arith.constant 0 : index
    %c0_23 = arith.constant 0 : index
    %30 = vector.load %arg7[%c0_22, %c0_23] : memref<8x32xf32, #tpu.memory_space<vmem>>, vector<8x32xf32>
    tpu.vector_store %arg7[%c0_22, %c0_23], %29 {strides = array<i32>} : memref<8x32xf32, #tpu.memory_space<vmem>>, vector<8x32xf32>,
    return
  }
}

</mosaic_0001>

<llo_original>
// kernel: tpu_custom_call.1
$region0: #{tpu_custom_call.1}
  #allocation0 [shape = 'u32[]', space=smem, size = 0x4, offset = 0x4, fixed_abs, tag = 'smem constant byte address 0x4 - core index']
  #allocation1 [shape = 'u32[144,128]{1,0:T(1,128)}', space=vmem, size = 0x12000, scoped, tag = 'internal scratch']
  %s0 = inlined_call_operand.hbm [shape: f32[8,8], index: 0, kind: input, shape index: {}]
  %s1 = inlined_call_operand.hbm [shape: f32[8,32], index: 1, kind: input, shape index: {}]
  %s2 = inlined_call_operand.hbm [shape: f32[32,48], index: 2, kind: input, shape index: {}]
  %s3 = inlined_call_operand.vmem [shape: f32[1,48], index: 3, kind: input, shape index: {}]
  %s4 = inlined_call_operand.hbm [shape: f32[16,32], index: 4, kind: input, shape index: {}]
  %s5 = inlined_call_operand.vmem [shape: f32[1,32], index: 5, kind: input, shape index: {}]
  %s6 = inlined_call_operand.hbm [shape: f32[8,8], index: 6, kind: output, shape index: {0}]
  %s7 = inlined_call_operand.hbm [shape: f32[8,32], index: 7, kind: output, shape index: {1}]
  %8 = xla_tuple %s6, %s7
  %s9 = sld [smem:[#allocation0]]
  $region58: #{tpu_custom_call.1} parent=0
    _
  %s11 = ssub.s32 1, %s9
  %s12 = scalar_select 0, %s11, %s9
  $region1: #{tpu_custom_call.1} parent=0
    #allocation2 [shape = 'u8[4096]{0}', space=vmem, size = 0x1000, scoped, tag = 'input window, operand 0, single buffered']
    #allocation3 [shape = 's32[1]{0}', space=sflag, size = 0x4, scoped, tag = 'scoped memory for tpu_custom_call.1']
    #allocation4 [shape = 's32[1]{0}', space=sflag, size = 0x4, scoped, tag = 'scoped memory for tpu_custom_call.1']
    #allocation5 [shape = 'u8[4096]{0}', space=vmem, size = 0x1000, scoped, tag = 'input window, operand 1, single buffered']
    #allocation6 [shape = 's32[1]{0}', space=sflag, size = 0x4, scoped, tag = 'scoped memory for tpu_custom_call.1']
    #allocation7 [shape = 'u8[16384]{0}', space=vmem, size = 0x4000, scoped, tag = 'input window, operand 2, single buffered']
    #allocation8 [shape = 'u8[8192]{0}', space=vmem, size = 0x2000, scoped, tag = 'input window, operand 4, single buffered']
    #allocation9 [shape = 's32[1]{0}', space=sflag, size = 0x4, scoped, tag = 'scoped memory for tpu_custom_call.1']
    #allocation10 [shape = 'u8[4096]{0}', space=vmem, size = 0x1000, scoped, tag = 'output window, operand 0, single buffered']
    #allocation11 [shape = 'u8[4096]{0}', space=vmem, size = 0x1000, scoped, tag = 'output window, operand 1, single buffered']
    #allocation12 [shape = 's32[1]{0}', space=sflag, size = 0x4, scoped, tag = 'scoped memory for tpu_custom_call.1']
    %13 = vsyncpa [#allocation3], 0
    %14 = vsyncpa [#allocation6], 0
    %15 = vsyncpa [#allocation9], 0
    %16 = vsyncpa [#allocation4], 0
    %17 = vsyncpa [#allocation12], 0
    // Predicated region
    $region2: #{tpu_custom_call.1} parent=1 // pred_check
      _
    $region3: #{tpu_custom_call.1} parent=1 // pred_check_branch
      %19 = sbr.rel (0) target = $region5
    $region4: #{tpu_custom_call.1} parent=1 // pred_region
      %s21 = ssub.s32 128, 128
      %22 = vsyncadd [#allocation3], %s21
      %s24 = sshll.u32 [#allocation2], 4
      %s25 = int_to_ptr.vmem [resolvable:$true] %s24
      %27 = dma.hbm_to_vmem [thread:$0]  %s0, 128, %s25, [#allocation3]
    $region5: #{tpu_custom_call.1} parent=1 // pred_fallthru
      _
    // Predicated region
    $region6: #{tpu_custom_call.1} parent=1 // pred_check
      _
    $region7: #{tpu_custom_call.1} parent=1 // pred_check_branch
      %29 = sbr.rel (0) target = $region9
    $region8: #{tpu_custom_call.1} parent=1 // pred_region
      %s31 = ssub.s32 128, 128
      %32 = vsyncadd [#allocation6], %s31
      %s34 = sshll.u32 [#allocation5], 4
      %s35 = int_to_ptr.vmem [resolvable:$true] %s34
      %37 = dma.hbm_to_vmem [thread:$0]  %s1, 128, %s35, [#allocation6]
    $region9: #{tpu_custom_call.1} parent=1 // pred_fallthru
      _
    // Predicated region
    $region10: #{tpu_custom_call.1} parent=1 // pred_check
      _
    $region11: #{tpu_custom_call.1} parent=1 // pred_check_branch
      %39 = sbr.rel (0) target = $region13
    $region12: #{tpu_custom_call.1} parent=1 // pred_region
      %s41 = ssub.s32 512, 512
      %42 = vsyncadd [#allocation6], %s41
      %s43 = sshll.u32 [#allocation7], 4
      %s44 = int_to_ptr.vmem [resolvable:$true] %s43
      %49 = dma.hbm_to_vmem [thread:$0]  %s2, 512, %s44, [#allocation6], 128, 128, 8
    $region13: #{tpu_custom_call.1} parent=1 // pred_fallthru
      _
    // Predicated region
    $region14: #{tpu_custom_call.1} parent=1 // pred_check
      _
    $region15: #{tpu_custom_call.1} parent=1 // pred_check_branch
      %51 = sbr.rel (0) target = $region17
    $region16: #{tpu_custom_call.1} parent=1 // pred_region
      _
    $region17: #{tpu_custom_call.1} parent=1 // pred_fallthru
      _
    // Predicated region
    $region18: #{tpu_custom_call.1} parent=1 // pred_check
      _
    $region19: #{tpu_custom_call.1} parent=1 // pred_check_branch
      %53 = sbr.rel (0) target = $region21
    $region20: #{tpu_custom_call.1} parent=1 // pred_region
      %s55 = ssub.s32 256, 256
      %56 = vsyncadd [#allocation9], %s55
      %s57 = sshll.u32 [#allocation8], 4
      %s58 = int_to_ptr.vmem [resolvable:$true] %s57
      %63 = dma.hbm_to_vmem [thread:$0]  %s4, 256, %s58, [#allocation9], 128, 128, 8
    $region21: #{tpu_custom_call.1} parent=1 // pred_fallthru
      _
    // Predicated region
    $region22: #{tpu_custom_call.1} parent=1 // pred_check
      _
    $region23: #{tpu_custom_call.1} parent=1 // pred_check_branch
      %65 = sbr.rel (0) target = $region25
    $region24: #{tpu_custom_call.1} parent=1 // pred_region
      _
    $region25: #{tpu_custom_call.1} parent=1 // pred_fallthru
      _
    // Predicated region
    $region26: #{tpu_custom_call.1} parent=1 // pred_check
      _
    $region27: #{tpu_custom_call.1} parent=1 // pred_check_branch
      %67 = sbr.rel (0) target = $region29
    $region28: #{tpu_custom_call.1} parent=1 // pred_region
      %68 = dma.done [#allocation3], 128
    $region29: #{tpu_custom_call.1} parent=1 // pred_fallthru
      _
    // Predicated region
    $region30: #{tpu_custom_call.1} parent=1 // pred_check
      _
    $region31: #{tpu_custom_call.1} parent=1 // pred_check_branch
      %70 = sbr.rel (0) target = $region33
    $region32: #{tpu_custom_call.1} parent=1 // pred_region
      %71 = dma.done [#allocation6], 128
    $region33: #{tpu_custom_call.1} parent=1 // pred_fallthru
      _
    // Predicated region
    $region34: #{tpu_custom_call.1} parent=1 // pred_check
      _
    $region35: #{tpu_custom_call.1} parent=1 // pred_check_branch
      %73 = sbr.rel (0) target = $region37
    $region36: #{tpu_custom_call.1} parent=1 // pred_region
      %74 = dma.done [#allocation6], 512
    $region37: #{tpu_custom_call.1} parent=1 // pred_fallthru
      _
    // Predicated region
    $region38: #{tpu_custom_call.1} parent=1 // pred_check
      _
    $region39: #{tpu_custom_call.1} parent=1 // pred_check_branch
      %76 = sbr.rel (0) target = $region41
    $region40: #{tpu_custom_call.1} parent=1 // pred_region
      %77 = dma.done [#allocation9], 256
    $region41: #{tpu_custom_call.1} parent=1 // pred_fallthru
      _
    %v78 = vld [vmem:[#allocation2] sm:$0xff]
    %v79 = vld [vmem:[#allocation5] sm:$0xff]
    %vm80 = vcmask 64512
    %v82 = vsel %vm80, %v78, 0
    %84 = vmatprep.subr.mxu0 0.0
    %v85 = vand.u32 %v79, 4294901760
    %86 = vmatpush1.msra.mxu0 %v85
    %87 = vmatprep.subr.mxu0 0.0
    %88 = vmatpush1.msra.mxu0 0.0
    %89 = vmatprep.subr.mxu0 0.0
    %90 = vmatpush1.msra.mxu0 0.0
    %91 = vmatprep.subr.mxu0 0.0
    %92 = vmatpush1.msra.mxu0 0.0
    %93 = vmatprep.subr.mxu0 0.0
    %94 = vmatpush1.msra.mxu0 0.0
    %95 = vmatprep.subr.mxu0 0.0
    %96 = vmatpush1.msra.mxu0 0.0
    %97 = vmatprep.subr.mxu0 0.0
    %98 = vmatpush1.msra.mxu0 0.0
    %99 = vmatprep.subr.mxu0 0.0
    %100 = vmatpush1.msra.mxu0 0.0
    %101 = vmatprep.subr.mxu0 0.0
    %102 = vmatpush1.msra.mxu0 0.0
    %103 = vmatprep.subr.mxu0 0.0
    %104 = vmatpush1.msra.mxu0 0.0
    %105 = vmatprep.subr.mxu0 0.0
    %106 = vmatpush1.msra.mxu0 0.0
    %107 = vmatprep.subr.mxu0 0.0
    %108 = vmatpush1.msra.mxu0 0.0
    %109 = vmatprep.subr.mxu0 0.0
    %110 = vmatpush1.msra.mxu0 0.0
    %111 = vmatprep.subr.mxu0 0.0
    %112 = vmatpush1.msra.mxu0 0.0
    %113 = vmatprep.subr.mxu0 0.0
    %114 = vmatpush1.msra.mxu0 0.0
    %115 = vmatprep.subr.mxu0 0.0
    %116 = vmatpush1.msra.mxu0 0.0
    %117 = vmatprep.subr.mxu0 0.0
    %118 = vmatpush1.msra.mxu0 0.0
    %119 = vmatprep.subr.mxu0 0.0
    %120 = vmatpush1.msra.mxu0 0.0
    %121 = vmatprep.subr.mxu0 0.0
    %122 = vmatpush1.msra.mxu0 0.0
    %123 = vmatprep.subr.mxu0 0.0
    %124 = vmatpush1.msra.mxu0 0.0
    %125 = vmatprep.subr.mxu0 0.0
    %126 = vmatpush1.msra.mxu0 0.0
    %127 = vmatprep.subr.mxu0 0.0
    %128 = vmatpush1.msra.mxu0 0.0
    %129 = vmatprep.subr.mxu0 0.0
    %130 = vmatpush1.msra.mxu0 0.0
    %131 = vmatprep.subr.mxu0 0.0
    %132 = vmatpush1.msra.mxu0 0.0
    %133 = vmatprep.subr.mxu0 0.0
    %134 = vmatpush1.msra.mxu0 0.0
    %135 = vmatprep.subr.mxu0 0.0
    %136 = vmatpush1.msra.mxu0 0.0
    %137 = vmatprep.subr.mxu0 0.0
    %138 = vmatpush1.msra.mxu0 0.0
    %139 = vmatprep.subr.mxu0 0.0
    %140 = vmatpush1.msra.mxu0 0.0
    %141 = vmatprep.subr.mxu0 0.0
    %142 = vmatpush1.msra.mxu0 0.0
    %143 = vmatprep.subr.mxu0 0.0
    %144 = vmatpush1.msra.mxu0 0.0
    %145 = vmatprep.subr.mxu0 0.0
    %146 = vmatpush1.msra.mxu0 0.0
    %147 = vmatprep.subr.mxu0 0.0
    %148 = vmatpush1.msra.mxu0 0.0
    %149 = vmatprep.mubr.f32.mxu0 0.0
    %v150 = vand.u32 %v82, 4294901760
    %v151 = vsub.f32 %v82, %v150
    %v152 = vand.u32 %v151, 4294901760
    %v153 = vsub.f32 %v151, %v152
    %v154 = vand.u32 %v153, 4294901760
    %155 = vmatmul.mubr.f32.gmra.mrb[0].mxu0 %v154
    %v156 = vpop.f32.mrb[0].mxu0
    %v157 = vadd.f32 0.0, %v156
    %v158 = vpop.f32.mrb[0].mxu0
    %159 = vdwg.mxu0
    %160 = vmatprep.subr.mxu0 0.0
    %v161 = vand.u32 %v79, 4294901760
    %v162 = vsub.f32 %v79, %v161
    %v163 = vand.u32 %v162, 4294901760
    %v164 = vsub.f32 %v162, %v163
    %v165 = vand.u32 %v164, 4294901760
    %166 = vmatpush1.msra.mxu0 %v165
    %167 = vmatprep.subr.mxu0 0.0
    %168 = vmatpush1.msra.mxu0 0.0
    %169 = vmatprep.subr.mxu0 0.0
    %170 = vmatpush1.msra.mxu0 0.0
    %171 = vmatprep.subr.mxu0 0.0
    %172 = vmatpush1.msra.mxu0 0.0
    %173 = vmatprep.subr.mxu0 0.0
    %174 = vmatpush1.msra.mxu0 0.0
    %175 = vmatprep.subr.mxu0 0.0
    %176 = vmatpush1.msra.mxu0 0.0
    %177 = vmatprep.subr.mxu0 0.0
    %178 = vmatpush1.msra.mxu0 0.0
    %179 = vmatprep.subr.mxu0 0.0
    %180 = vmatpush1.msra.mxu0 0.0
    %181 = vmatprep.subr.mxu0 0.0
    %182 = vmatpush1.msra.mxu0 0.0
    %183 = vmatprep.subr.mxu0 0.0
    %184 = vmatpush1.msra.mxu0 0.0
    %185 = vmatprep.subr.mxu0 0.0
    %186 = vmatpush1.msra.mxu0 0.0
    %187 = vmatprep.subr.mxu0 0.0
    %188 = vmatpush1.msra.mxu0 0.0
    %189 = vmatprep.subr.mxu0 0.0
    %190 = vmatpush1.msra.mxu0 0.0
    %191 = vmatprep.subr.mxu0 0.0
    %192 = vmatpush1.msra.mxu0 0.0
    %193 = vmatprep.subr.mxu0 0.0
    %194 = vmatpush1.msra.mxu0 0.0
    %195 = vmatprep.subr.mxu0 0.0
    %196 = vmatpush1.msra.mxu0 0.0
    %197 = vmatprep.subr.mxu0 0.0
    %198 = vmatpush1.msra.mxu0 0.0
    %199 = vmatprep.subr.mxu0 0.0
    %200 = vmatpush1.msra.mxu0 0.0
    %201 = vmatprep.subr.mxu0 0.0
    %202 = vmatpush1.msra.mxu0 0.0
    %203 = vmatprep.subr.mxu0 0.0
    %204 = vmatpush1.msra.mxu0 0.0
    %205 = vmatprep.subr.mxu0 0.0
    %206 = vmatpush1.msra.mxu0 0.0
    %207 = vmatprep.subr.mxu0 0.0
    %208 = vmatpush1.msra.mxu0 0.0
    %209 = vmatprep.subr.mxu0 0.0
    %210 = vmatpush1.msra.mxu0 0.0
    %211 = vmatprep.subr.mxu0 0.0
    %212 = vmatpush1.msra.mxu0 0.0
    %213 = vmatprep.subr.mxu0 0.0
    %214 = vmatpush1.msra.mxu0 0.0
    %215 = vmatprep.subr.mxu0 0.0
    %216 = vmatpush1.msra.mxu0 0.0
    %217 = vmatprep.subr.mxu0 0.0
    %218 = vmatpush1.msra.mxu0 0.0
    %219 = vmatprep.subr.mxu0 0.0
    %220 = vmatpush1.msra.mxu0 0.0
    %221 = vmatprep.subr.mxu0 0.0
    %222 = vmatpush1.msra.mxu0 0.0
    %223 = vmatprep.subr.mxu0 0.0
    %224 = vmatpush1.msra.mxu0 0.0
    %225 = vmatprep.subr.mxu0 0.0
    %226 = vmatpush1.msra.mxu0 0.0
    %227 = vmatprep.subr.mxu0 0.0
    %228 = vmatpush1.msra.mxu0 0.0
    %229 = vmatprep.mubr.f32.mxu0 0.0
    %v230 = vand.u32 %v82, 4294901760
    %231 = vmatmul.mubr.f32.gmra.mrb[0].mxu0 %v230
    %v232 = vpop.f32.mrb[0].mxu0
    %v233 = vadd.f32 %v157, %v232
    %v234 = vpop.f32.mrb[0].mxu0
    %235 = vdwg.mxu0
    %236 = vmatprep.subr.mxu0 0.0
    %v237 = vand.u32 %v79, 4294901760
    %v238 = vsub.f32 %v79, %v237
    %239 = vmatpush1.msra.mxu0 %v238
    %240 = vmatprep.subr.mxu0 0.0
    %241 = vmatpush1.msra.mxu0 0.0
    %242 = vmatprep.subr.mxu0 0.0
    %243 = vmatpush1.msra.mxu0 0.0
    %244 = vmatprep.subr.mxu0 0.0
    %245 = vmatpush1.msra.mxu0 0.0
    %246 = vmatprep.subr.mxu0 0.0
    %247 = vmatpush1.msra.mxu0 0.0
    %248 = vmatprep.subr.mxu0 0.0
    %249 = vmatpush1.msra.mxu0 0.0
    %250 = vmatprep.subr.mxu0 0.0
    %251 = vmatpush1.msra.mxu0 0.0
    %252 = vmatprep.subr.mxu0 0.0
    %253 = vmatpush1.msra.mxu0 0.0
    %254 = vmatprep.subr.mxu0 0.0
    %255 = vmatpush1.msra.mxu0 0.0
    %256 = vmatprep.subr.mxu0 0.0
    %257 = vmatpush1.msra.mxu0 0.0
    %258 = vmatprep.subr.mxu0 0.0
    %259 = vmatpush1.msra.mxu0 0.0
    %260 = vmatprep.subr.mxu0 0.0
    %261 = vmatpush1.msra.mxu0 0.0
    %262 = vmatprep.subr.mxu0 0.0
    %263 = vmatpush1.msra.mxu0 0.0
    %264 = vmatprep.subr.mxu0 0.0
    %265 = vmatpush1.msra.mxu0 0.0
    %266 = vmatprep.subr.mxu0 0.0
    %267 = vmatpush1.msra.mxu0 0.0
    %268 = vmatprep.subr.mxu0 0.0
    %269 = vmatpush1.msra.mxu0 0.0
    %270 = vmatprep.subr.mxu0 0.0
    %271 = vmatpush1.msra.mxu0 0.0
    %272 = vmatprep.subr.mxu0 0.0
    %273 = vmatpush1.msra.mxu0 0.0
    %274 = vmatprep.subr.mxu0 0.0
    %275 = vmatpush1.msra.mxu0 0.0
    %276 = vmatprep.subr.mxu0 0.0
    %277 = vmatpush1.msra.mxu0 0.0
    %278 = vmatprep.subr.mxu0 0.0
    %279 = vmatpush1.msra.mxu0 0.0
    %280 = vmatprep.subr.mxu0 0.0
    %281 = vmatpush1.msra.mxu0 0.0
    %282 = vmatprep.subr.mxu0 0.0
    %283 = vmatpush1.msra.mxu0 0.0
    %284 = vmatprep.subr.mxu0 0.0
    %285 = vmatpush1.msra.mxu0 0.0
    %286 = vmatprep.subr.mxu0 0.0
    %287 = vmatpush1.msra.mxu0 0.0
    %288 = vmatprep.subr.mxu0 0.0
    %289 = vmatpush1.msra.mxu0 0.0
    %290 = vmatprep.subr.mxu0 0.0
    %291 = vmatpush1.msra.mxu0 0.0
    %292 = vmatprep.subr.mxu0 0.0
    %293 = vmatpush1.msra.mxu0 0.0
    %294 = vmatprep.subr.mxu0 0.0
    %295 = vmatpush1.msra.mxu0 0.0
    %296 = vmatprep.subr.mxu0 0.0
    %297 = vmatpush1.msra.mxu0 0.0
    %298 = vmatprep.subr.mxu0 0.0
    %299 = vmatpush1.msra.mxu0 0.0
    %300 = vmatprep.subr.mxu0 0.0
    %301 = vmatpush1.msra.mxu0 0.0
    %302 = vmatprep.mubr.f32.mxu0 0.0
    %v303 = vand.u32 %v82, 4294901760
    %v304 = vsub.f32 %v82, %v303
    %305 = vmatmul.mubr.f32.gmra.mrb[0].mxu0 %v304
    %v306 = vpop.f32.mrb[0].mxu0
    %v307 = vadd.f32 %v233, %v306
    %v308 = vpop.f32.mrb[0].mxu0
    %309 = vdwg.mxu0
    %310 = vmatprep.subr.mxu0 0.0
    %v311 = vand.u32 %v79, 4294901760
    %312 = vmatpush1.msra.mxu0 %v311
    %313 = vmatprep.subr.mxu0 0.0
    %314 = vmatpush1.msra.mxu0 0.0
    %315 = vmatprep.subr.mxu0 0.0
    %316 = vmatpush1.msra.mxu0 0.0
    %317 = vmatprep.subr.mxu0 0.0
    %318 = vmatpush1.msra.mxu0 0.0
    %319 = vmatprep.subr.mxu0 0.0
    %320 = vmatpush1.msra.mxu0 0.0
    %321 = vmatprep.subr.mxu0 0.0
    %322 = vmatpush1.msra.mxu0 0.0
    %323 = vmatprep.subr.mxu0 0.0
    %324 = vmatpush1.msra.mxu0 0.0
    %325 = vmatprep.subr.mxu0 0.0
    %326 = vmatpush1.msra.mxu0 0.0
    %327 = vmatprep.subr.mxu0 0.0
    %328 = vmatpush1.msra.mxu0 0.0
    %329 = vmatprep.subr.mxu0 0.0
    %330 = vmatpush1.msra.mxu0 0.0
    %331 = vmatprep.subr.mxu0 0.0
    %332 = vmatpush1.msra.mxu0 0.0
    %333 = vmatprep.subr.mxu0 0.0
    %334 = vmatpush1.msra.mxu0 0.0
    %335 = vmatprep.subr.mxu0 0.0
    %336 = vmatpush1.msra.mxu0 0.0
    %337 = vmatprep.subr.mxu0 0.0
    %338 = vmatpush1.msra.mxu0 0.0
    %339 = vmatprep.subr.mxu0 0.0
    %340 = vmatpush1.msra.mxu0 0.0
    %341 = vmatprep.subr.mxu0 0.0
    %342 = vmatpush1.msra.mxu0 0.0
    %343 = vmatprep.subr.mxu0 0.0
    %344 = vmatpush1.msra.mxu0 0.0
    %345 = vmatprep.subr.mxu0 0.0
    %346 = vmatpush1.msra.mxu0 0.0
    %347 = vmatprep.subr.mxu0 0.0
    %348 = vmatpush1.msra.mxu0 0.0
    %349 = vmatprep.subr.mxu0 0.0
    %350 = vmatpush1.msra.mxu0 0.0
    %351 = vmatprep.subr.mxu0 0.0
    %352 = vmatpush1.msra.mxu0 0.0
    %353 = vmatprep.subr.mxu0 0.0
    %354 = vmatpush1.msra.mxu0 0.0
    %355 = vmatprep.subr.mxu0 0.0
    %356 = vmatpush1.msra.mxu0 0.0
    %357 = vmatprep.subr.mxu0 0.0
    %358 = vmatpush1.msra.mxu0 0.0
    %359 = vmatprep.subr.mxu0 0.0
    %360 = vmatpush1.msra.mxu0 0.0
    %361 = vmatprep.subr.mxu0 0.0
    %362 = vmatpush1.msra.mxu0 0.0
    %363 = vmatprep.subr.mxu0 0.0
    %364 = vmatpush1.msra.mxu0 0.0
    %365 = vmatprep.subr.mxu0 0.0
    %366 = vmatpush1.msra.mxu0 0.0
    %367 = vmatprep.subr.mxu0 0.0
    %368 = vmatpush1.msra.mxu0 0.0
    %369 = vmatprep.subr.mxu0 0.0
    %370 = vmatpush1.msra.mxu0 0.0
    %371 = vmatprep.subr.mxu0 0.0
    %372 = vmatpush1.msra.mxu0 0.0
    %373 = vmatprep.subr.mxu0 0.0
    %374 = vmatpush1.msra.mxu0 0.0
    %375 = vmatprep.mubr.f32.mxu0 0.0
    %v376 = vand.u32 %v82, 4294901760
    %v377 = vsub.f32 %v82, %v376
    %v378 = vand.u32 %v377, 4294901760
    %379 = vmatmul.mubr.f32.gmra.mrb[0].mxu0 %v378
    %v380 = vpop.f32.mrb[0].mxu0
    %v381 = vadd.f32 %v307, %v380
    %v382 = vpop.f32.mrb[0].mxu0
    %383 = vdwg.mxu0
    %384 = vmatprep.subr.mxu0 0.0
    %v385 = vand.u32 %v79, 4294901760
    %v386 = vsub.f32 %v79, %v385
    %v387 = vand.u32 %v386, 4294901760
    %388 = vmatpush1.msra.mxu0 %v387
    %389 = vmatprep.subr.mxu0 0.0
    %390 = vmatpush1.msra.mxu0 0.0
    %391 = vmatprep.subr.mxu0 0.0
    %392 = vmatpush1.msra.mxu0 0.0
    %393 = vmatprep.subr.mxu0 0.0
    %394 = vmatpush1.msra.mxu0 0.0
    %395 = vmatprep.subr.mxu0 0.0
    %396 = vmatpush1.msra.mxu0 0.0
    %397 = vmatprep.subr.mxu0 0.0
    %398 = vmatpush1.msra.mxu0 0.0
    %399 = vmatprep.subr.mxu0 0.0
    %400 = vmatpush1.msra.mxu0 0.0
    %401 = vmatprep.subr.mxu0 0.0
    %402 = vmatpush1.msra.mxu0 0.0
    %403 = vmatprep.subr.mxu0 0.0
    %404 = vmatpush1.msra.mxu0 0.0
    %405 = vmatprep.subr.mxu0 0.0
    %406 = vmatpush1.msra.mxu0 0.0
    %407 = vmatprep.subr.mxu0 0.0
    %408 = vmatpush1.msra.mxu0 0.0
    %409 = vmatprep.subr.mxu0 0.0
    %410 = vmatpush1.msra.mxu0 0.0
    %411 = vmatprep.subr.mxu0 0.0
    %412 = vmatpush1.msra.mxu0 0.0
    %413 = vmatprep.subr.mxu0 0.0
    %414 = vmatpush1.msra.mxu0 0.0
    %415 = vmatprep.subr.mxu0 0.0
    %416 = vmatpush1.msra.mxu0 0.0
    %417 = vmatprep.subr.mxu0 0.0
    %418 = vmatpush1.msra.mxu0 0.0
    %419 = vmatprep.subr.mxu0 0.0
    %420 = vmatpush1.msra.mxu0 0.0
    %421 = vmatprep.subr.mxu0 0.0
    %422 = vmatpush1.msra.mxu0 0.0
    %423 = vmatprep.subr.mxu0 0.0
    %424 = vmatpush1.msra.mxu0 0.0
    %425 = vmatprep.subr.mxu0 0.0
    %426 = vmatpush1.msra.mxu0 0.0
    %427 = vmatprep.subr.mxu0 0.0
    %428 = vmatpush1.msra.mxu0 0.0
    %429 = vmatprep.subr.mxu0 0.0
    %430 = vmatpush1.msra.mxu0 0.0
    %431 = vmatprep.subr.mxu0 0.0
    %432 = vmatpush1.msra.mxu0 0.0
    %433 = vmatprep.subr.mxu0 0.0
    %434 = vmatpush1.msra.mxu0 0.0
    %435 = vmatprep.subr.mxu0 0.0
    %436 = vmatpush1.msra.mxu0 0.0
    %437 = vmatprep.subr.mxu0 0.0
    %438 = vmatpush1.msra.mxu0 0.0
    %439 = vmatprep.subr.mxu0 0.0
    %440 = vmatpush1.msra.mxu0 0.0
    %441 = vmatprep.subr.mxu0 0.0
    %442 = vmatpush1.msra.mxu0 0.0
    %443 = vmatprep.subr.mxu0 0.0
    %444 = vmatpush1.msra.mxu0 0.0
    %445 = vmatprep.subr.mxu0 0.0
    %446 = vmatpush1.msra.mxu0 0.0
    %447 = vmatprep.subr.mxu0 0.0
    %448 = vmatpush1.msra.mxu0 0.0
    %449 = vmatprep.subr.mxu0 0.0
    %450 = vmatpush1.msra.mxu0 0.0
    %451 = vmatprep.mubr.f32.mxu0 0.0
    %v452 = vand.u32 %v82, 4294901760
    %453 = vmatmul.mubr.f32.gmra.mrb[0].mxu0 %v452
    %v454 = vpop.f32.mrb[0].mxu0
    %v455 = vadd.f32 %v381, %v454
    %v456 = vpop.f32.mrb[0].mxu0
    %457 = vdwg.mxu0
    %458 = vmatprep.subr.mxu0 0.0
    %v459 = vand.u32 %v79, 4294901760
    %460 = vmatpush1.msra.mxu0 %v459
    %461 = vmatprep.subr.mxu0 0.0
    %462 = vmatpush1.msra.mxu0 0.0
    %463 = vmatprep.subr.mxu0 0.0
    %464 = vmatpush1.msra.mxu0 0.0
    %465 = vmatprep.subr.mxu0 0.0
    %466 = vmatpush1.msra.mxu0 0.0
    %467 = vmatprep.subr.mxu0 0.0
    %468 = vmatpush1.msra.mxu0 0.0
    %469 = vmatprep.subr.mxu0 0.0
    %470 = vmatpush1.msra.mxu0 0.0
    %471 = vmatprep.subr.mxu0 0.0
    %472 = vmatpush1.msra.mxu0 0.0
    %473 = vmatprep.subr.mxu0 0.0
    %474 = vmatpush1.msra.mxu0 0.0
    %475 = vmatprep.subr.mxu0 0.0
    %476 = vmatpush1.msra.mxu0 0.0
    %477 = vmatprep.subr.mxu0 0.0
    %478 = vmatpush1.msra.mxu0 0.0
    %479 = vmatprep.subr.mxu0 0.0
    %480 = vmatpush1.msra.mxu0 0.0
    %481 = vmatprep.subr.mxu0 0.0
    %482 = vmatpush1.msra.mxu0 0.0
    %483 = vmatprep.subr.mxu0 0.0
    %484 = vmatpush1.msra.mxu0 0.0
    %485 = vmatprep.subr.mxu0 0.0
    %486 = vmatpush1.msra.mxu0 0.0
    %487 = vmatprep.subr.mxu0 0.0
    %488 = vmatpush1.msra.mxu0 0.0
    %489 = vmatprep.subr.mxu0 0.0
    %490 = vmatpush1.msra.mxu0 0.0
    %491 = vmatprep.subr.mxu0 0.0
    %492 = vmatpush1.msra.mxu0 0.0
    %493 = vmatprep.subr.mxu0 0.0
    %494 = vmatpush1.msra.mxu0 0.0
    %495 = vmatprep.subr.mxu0 0.0
    %496 = vmatpush1.msra.mxu0 0.0
    %497 = vmatprep.subr.mxu0 0.0
    %498 = vmatpush1.msra.mxu0 0.0
    %499 = vmatprep.subr.mxu0 0.0
    %500 = vmatpush1.msra.mxu0 0.0
    %501 = vmatprep.subr.mxu0 0.0
    %502 = vmatpush1.msra.mxu0 0.0
    %503 = vmatprep.subr.mxu0 0.0
    %504 = vmatpush1.msra.mxu0 0.0
    %505 = vmatprep.subr.mxu0 0.0
    %506 = vmatpush1.msra.mxu0 0.0
    %507 = vmatprep.subr.mxu0 0.0
    %508 = vmatpush1.msra.mxu0 0.0
    %509 = vmatprep.subr.mxu0 0.0
    %510 = vmatpush1.msra.mxu0 0.0
    %511 = vmatprep.subr.mxu0 0.0
    %512 = vmatpush1.msra.mxu0 0.0
    %513 = vmatprep.subr.mxu0 0.0
    %514 = vmatpush1.msra.mxu0 0.0
    %515 = vmatprep.subr.mxu0 0.0
    %516 = vmatpush1.msra.mxu0 0.0
    %517 = vmatprep.subr.mxu0 0.0
    %518 = vmatpush1.msra.mxu0 0.0
    %519 = vmatprep.subr.mxu0 0.0
    %520 = vmatpush1.msra.mxu0 0.0
    %521 = vmatprep.subr.mxu0 0.0
    %522 = vmatpush1.msra.mxu0 0.0
    %523 = vmatprep.mubr.f32.mxu0 0.0
    %v524 = vand.u32 %v82, 4294901760
    %525 = vmatmul.mubr.f32.gmra.mrb[0].mxu0 %v524
    %v526 = vpop.f32.mrb[0].mxu0
    %v527 = vadd.f32 %v455, %v526
    %v528 = vpop.f32.mrb[0].mxu0
    %529 = vdwg.mxu0
    %v530 = vld [vmem:[#allocation7] sm:$0xff]
    %v531 = vld [vmem:[#allocation7 + $0x8] sm:$0xff]
    %v532 = vld [vmem:[#allocation7 + $0x10] sm:$0xff]
    %v533 = vld [vmem:[#allocation7 + $0x18] sm:$0xff]
    %v534 = vld [vmem:[%s3] sm:$0x1]
    %v536 = vlaneseq
    %v537 = vshrl.u32 %v536, 7
    %v538 = vsub.s32 0, %v537
    %v539 = vrot.slane %v534, %v538
    %vm541 = vcmask 261120
    %v543 = vsel %vm541, %v527, 0
    %545 = vmatprep.subr.mxu0 0.0
    %v546 = vand.u32 %v530, 4294901760
    %547 = vmatpush1.msra.mxu0 %v546
    %548 = vmatprep.subr.mxu0 0.0
    %v549 = vand.u32 %v531, 4294901760
    %550 = vmatpush1.msra.mxu0 %v549
    %551 = vmatprep.subr.mxu0 0.0
    %v552 = vand.u32 %v532, 4294901760
    %553 = vmatpush1.msra.mxu0 %v552
    %554 = vmatprep.subr.mxu0 0.0
    %v555 = vand.u32 %v533, 4294901760
    %556 = vmatpush1.msra.mxu0 %v555
    %557 = vmatprep.subr.mxu0 0.0
    %558 = vmatpush1.msra.mxu0 0.0
    %559 = vmatprep.subr.mxu0 0.0
    %560 = vmatpush1.msra.mxu0 0.0
    %561 = vmatprep.subr.mxu0 0.0
    %562 = vmatpush1.msra.mxu0 0.0
    %563 = vmatprep.subr.mxu0 0.0
    %564 = vmatpush1.msra.mxu0 0.0
    %565 = vmatprep.subr.mxu0 0.0
    %566 = vmatpush1.msra.mxu0 0.0
    %567 = vmatprep.subr.mxu0 0.0
    %568 = vmatpush1.msra.mxu0 0.0
    %569 = vmatprep.subr.mxu0 0.0
    %570 = vmatpush1.msra.mxu0 0.0
    %571 = vmatprep.subr.mxu0 0.0
    %572 = vmatpush1.msra.mxu0 0.0
    %573 = vmatprep.subr.mxu0 0.0
    %574 = vmatpush1.msra.mxu0 0.0
    %575 = vmatprep.subr.mxu0 0.0
    %576 = vmatpush1.msra.mxu0 0.0
    %577 = vmatprep.subr.mxu0 0.0
    %578 = vmatpush1.msra.mxu0 0.0
    %579 = vmatprep.subr.mxu0 0.0
    %580 = vmatpush1.msra.mxu0 0.0
    %581 = vmatprep.subr.mxu0 0.0
    %582 = vmatpush1.msra.mxu0 0.0
    %583 = vmatprep.subr.mxu0 0.0
    %584 = vmatpush1.msra.mxu0 0.0
    %585 = vmatprep.subr.mxu0 0.0
    %586 = vmatpush1.msra.mxu0 0.0
    %587 = vmatprep.subr.mxu0 0.0
    %588 = vmatpush1.msra.mxu0 0.0
    %589 = vmatprep.subr.mxu0 0.0
    %590 = vmatpush1.msra.mxu0 0.0
    %591 = vmatprep.subr.mxu0 0.0
    %592 = vmatpush1.msra.mxu0 0.0
    %593 = vmatprep.subr.mxu0 0.0
    %594 = vmatpush1.msra.mxu0 0.0
    %595 = vmatprep.subr.mxu0 0.0
    %596 = vmatpush1.msra.mxu0 0.0
    %597 = vmatprep.subr.mxu0 0.0
    %598 = vmatpush1.msra.mxu0 0.0
    %599 = vmatprep.subr.mxu0 0.0
    %600 = vmatpush1.msra.mxu0 0.0
    %601 = vmatprep.subr.mxu0 0.0
    %602 = vmatpush1.msra.mxu0 0.0
    %603 = vmatprep.subr.mxu0 0.0
    %604 = vmatpush1.msra.mxu0 0.0
    %605 = vmatprep.subr.mxu0 0.0
    %606 = vmatpush1.msra.mxu0 0.0
    %607 = vmatprep.subr.mxu0 0.0
    %608 = vmatpush1.msra.mxu0 0.0
    %609 = vmatprep.subr.mxu0 0.0
    %610 = vmatpush1.msra.mxu0 0.0
    %611 = vmatprep.subr.mxu0 0.0
    %612 = vmatpush1.msra.mxu0 0.0
    %613 = vmatprep.mubr.f32.mxu0 0.0
    %v614 = vand.u32 %v543, 4294901760
    %v615 = vsub.f32 %v543, %v614
    %v616 = vand.u32 %v615, 4294901760
    %v617 = vsub.f32 %v615, %v616
    %v618 = vand.u32 %v617, 4294901760
    %619 = vmatmul.mubr.f32.gmra.mrb[0].mxu0 %v618
    %v620 = vpop.f32.mrb[0].mxu0
    %v621 = vadd.f32 %v539, %v620
    %v622 = vpop.f32.mrb[0].mxu0
    %623 = vdwg.mxu0
    %624 = vmatprep.subr.mxu0 0.0
    %v625 = vand.u32 %v530, 4294901760
    %v626 = vsub.f32 %v530, %v625
    %v627 = vand.u32 %v626, 4294901760
    %v628 = vsub.f32 %v626, %v627
    %v629 = vand.u32 %v628, 4294901760
    %630 = vmatpush1.msra.mxu0 %v629
    %631 = vmatprep.subr.mxu0 0.0
    %v632 = vand.u32 %v531, 4294901760
    %v633 = vsub.f32 %v531, %v632
    %v634 = vand.u32 %v633, 4294901760
    %v635 = vsub.f32 %v633, %v634
    %v636 = vand.u32 %v635, 4294901760
    %637 = vmatpush1.msra.mxu0 %v636
    %638 = vmatprep.subr.mxu0 0.0
    %v639 = vand.u32 %v532, 4294901760
    %v640 = vsub.f32 %v532, %v639
    %v641 = vand.u32 %v640, 4294901760
    %v642 = vsub.f32 %v640, %v641
    %v643 = vand.u32 %v642, 4294901760
    %644 = vmatpush1.msra.mxu0 %v643
    %645 = vmatprep.subr.mxu0 0.0
    %v646 = vand.u32 %v533, 4294901760
    %v647 = vsub.f32 %v533, %v646
    %v648 = vand.u32 %v647, 4294901760
    %v649 = vsub.f32 %v647, %v648
    %v650 = vand.u32 %v649, 4294901760
    %651 = vmatpush1.msra.mxu0 %v650
    %652 = vmatprep.subr.mxu0 0.0
    %653 = vmatpush1.msra.mxu0 0.0
    %654 = vmatprep.subr.mxu0 0.0
    %655 = vmatpush1.msra.mxu0 0.0
    %656 = vmatprep.subr.mxu0 0.0
    %657 = vmatpush1.msra.mxu0 0.0
    %658 = vmatprep.subr.mxu0 0.0
    %659 = vmatpush1.msra.mxu0 0.0
    %660 = vmatprep.subr.mxu0 0.0
    %661 = vmatpush1.msra.mxu0 0.0
    %662 = vmatprep.subr.mxu0 0.0
    %663 = vmatpush1.msra.mxu0 0.0
    %664 = vmatprep.subr.mxu0 0.0
    %665 = vmatpush1.msra.mxu0 0.0
    %666 = vmatprep.subr.mxu0 0.0
    %667 = vmatpush1.msra.mxu0 0.0
    %668 = vmatprep.subr.mxu0 0.0
    %669 = vmatpush1.msra.mxu0 0.0
    %670 = vmatprep.subr.mxu0 0.0
    %671 = vmatpush1.msra.mxu0 0.0
    %672 = vmatprep.subr.mxu0 0.0
    %673 = vmatpush1.msra.mxu0 0.0
    %674 = vmatprep.subr.mxu0 0.0
    %675 = vmatpush1.msra.mxu0 0.0
    %676 = vmatprep.subr.mxu0 0.0
    %677 = vmatpush1.msra.mxu0 0.0
    %678 = vmatprep.subr.mxu0 0.0
    %679 = vmatpush1.msra.mxu0 0.0
    %680 = vmatprep.subr.mxu0 0.0
    %681 = vmatpush1.msra.mxu0 0.0
    %682 = vmatprep.subr.mxu0 0.0
    %683 = vmatpush1.msra.mxu0 0.0
    %684 = vmatprep.subr.mxu0 0.0
    %685 = vmatpush1.msra.mxu0 0.0
    %686 = vmatprep.subr.mxu0 0.0
    %687 = vmatpush1.msra.mxu0 0.0
    %688 = vmatprep.subr.mxu0 0.0
    %689 = vmatpush1.msra.mxu0 0.0
    %690 = vmatprep.subr.mxu0 0.0
    %691 = vmatpush1.msra.mxu0 0.0
    %692 = vmatprep.subr.mxu0 0.0
    %693 = vmatpush1.msra.mxu0 0.0
    %694 = vmatprep.subr.mxu0 0.0
    %695 = vmatpush1.msra.mxu0 0.0
    %696 = vmatprep.subr.mxu0 0.0
    %697 = vmatpush1.msra.mxu0 0.0
    %698 = vmatprep.subr.mxu0 0.0
    %699 = vmatpush1.msra.mxu0 0.0
    %700 = vmatprep.subr.mxu0 0.0
    %701 = vmatpush1.msra.mxu0 0.0
    %702 = vmatprep.subr.mxu0 0.0
    %703 = vmatpush1.msra.mxu0 0.0
    %704 = vmatprep.subr.mxu0 0.0
    %705 = vmatpush1.msra.mxu0 0.0
    %706 = vmatprep.subr.mxu0 0.0
    %707 = vmatpush1.msra.mxu0 0.0
    %708 = vmatprep.mubr.f32.mxu0 0.0
    %v709 = vand.u32 %v543, 4294901760
    %710 = vmatmul.mubr.f32.gmra.mrb[0].mxu0 %v709
    %v711 = vpop.f32.mrb[0].mxu0
    %v712 = vadd.f32 %v621, %v711
    %v713 = vpop.f32.mrb[0].mxu0
    %714 = vdwg.mxu0
    %715 = vmatprep.subr.mxu0 0.0
    %v716 = vand.u32 %v530, 4294901760
    %v717 = vsub.f32 %v530, %v716
    %718 = vmatpush1.msra.mxu0 %v717
    %719 = vmatprep.subr.mxu0 0.0
    %v720 = vand.u32 %v531, 4294901760
    %v721 = vsub.f32 %v531, %v720
    %722 = vmatpush1.msra.mxu0 %v721
    %723 = vmatprep.subr.mxu0 0.0
    %v724 = vand.u32 %v532, 4294901760
    %v725 = vsub.f32 %v532, %v724
    %726 = vmatpush1.msra.mxu0 %v725
    %727 = vmatprep.subr.mxu0 0.0
    %v728 = vand.u32 %v533, 4294901760
    %v729 = vsub.f32 %v533, %v728
    %730 = vmatpush1.msra.mxu0 %v729
    %731 = vmatprep.subr.mxu0 0.0
    %732 = vmatpush1.msra.mxu0 0.0
    %733 = vmatprep.subr.mxu0 0.0
    %734 = vmatpush1.msra.mxu0 0.0
    %735 = vmatprep.subr.mxu0 0.0
    %736 = vmatpush1.msra.mxu0 0.0
    %737 = vmatprep.subr.mxu0 0.0
    %738 = vmatpush1.msra.mxu0 0.0
    %739 = vmatprep.subr.mxu0 0.0
    %740 = vmatpush1.msra.mxu0 0.0
    %741 = vmatprep.subr.mxu0 0.0
    %742 = vmatpush1.msra.mxu0 0.0
    %743 = vmatprep.subr.mxu0 0.0
    %744 = vmatpush1.msra.mxu0 0.0
    %745 = vmatprep.subr.mxu0 0.0
    %746 = vmatpush1.msra.mxu0 0.0
    %747 = vmatprep.subr.mxu0 0.0
    %748 = vmatpush1.msra.mxu0 0.0
    %749 = vmatprep.subr.mxu0 0.0
    %750 = vmatpush1.msra.mxu0 0.0
    %751 = vmatprep.subr.mxu0 0.0
    %752 = vmatpush1.msra.mxu0 0.0
    %753 = vmatprep.subr.mxu0 0.0
    %754 = vmatpush1.msra.mxu0 0.0
    %755 = vmatprep.subr.mxu0 0.0
    %756 = vmatpush1.msra.mxu0 0.0
    %757 = vmatprep.subr.mxu0 0.0
    %758 = vmatpush1.msra.mxu0 0.0
    %759 = vmatprep.subr.mxu0 0.0
    %760 = vmatpush1.msra.mxu0 0.0
    %761 = vmatprep.subr.mxu0 0.0
    %762 = vmatpush1.msra.mxu0 0.0
    %763 = vmatprep.subr.mxu0 0.0
    %764 = vmatpush1.msra.mxu0 0.0
    %765 = vmatprep.subr.mxu0 0.0
    %766 = vmatpush1.msra.mxu0 0.0
    %767 = vmatprep.subr.mxu0 0.0
    %768 = vmatpush1.msra.mxu0 0.0
    %769 = vmatprep.subr.mxu0 0.0
    %770 = vmatpush1.msra.mxu0 0.0
    %771 = vmatprep.subr.mxu0 0.0
    %772 = vmatpush1.msra.mxu0 0.0
    %773 = vmatprep.subr.mxu0 0.0
    %774 = vmatpush1.msra.mxu0 0.0
    %775 = vmatprep.subr.mxu0 0.0
    %776 = vmatpush1.msra.mxu0 0.0
    %777 = vmatprep.subr.mxu0 0.0
    %778 = vmatpush1.msra.mxu0 0.0
    %779 = vmatprep.subr.mxu0 0.0
    %780 = vmatpush1.msra.mxu0 0.0
    %781 = vmatprep.subr.mxu0 0.0
    %782 = vmatpush1.msra.mxu0 0.0
    %783 = vmatprep.subr.mxu0 0.0
    %784 = vmatpush1.msra.mxu0 0.0
    %785 = vmatprep.subr.mxu0 0.0
    %786 = vmatpush1.msra.mxu0 0.0
    %787 = vmatprep.mubr.f32.mxu0 0.0
    %v788 = vand.u32 %v543, 4294901760
    %v789 = vsub.f32 %v543, %v788
    %790 = vmatmul.mubr.f32.gmra.mrb[0].mxu0 %v789
    %v791 = vpop.f32.mrb[0].mxu0
    %v792 = vadd.f32 %v712, %v791
    %v793 = vpop.f32.mrb[0].mxu0
    %794 = vdwg.mxu0
    %795 = vmatprep.subr.mxu0 0.0
    %v796 = vand.u32 %v530, 4294901760
    %797 = vmatpush1.msra.mxu0 %v796
    %798 = vmatprep.subr.mxu0 0.0
    %v799 = vand.u32 %v531, 4294901760
    %800 = vmatpush1.msra.mxu0 %v799
    %801 = vmatprep.subr.mxu0 0.0
    %v802 = vand.u32 %v532, 4294901760
    %803 = vmatpush1.msra.mxu0 %v802
    %804 = vmatprep.subr.mxu0 0.0
    %v805 = vand.u32 %v533, 4294901760
    %806 = vmatpush1.msra.mxu0 %v805
    %807 = vmatprep.subr.mxu0 0.0
    %808 = vmatpush1.msra.mxu0 0.0
    %809 = vmatprep.subr.mxu0 0.0
    %810 = vmatpush1.msra.mxu0 0.0
    %811 = vmatprep.subr.mxu0 0.0
    %812 = vmatpush1.msra.mxu0 0.0
    %813 = vmatprep.subr.mxu0 0.0
    %814 = vmatpush1.msra.mxu0 0.0
    %815 = vmatprep.subr.mxu0 0.0
    %816 = vmatpush1.msra.mxu0 0.0
    %817 = vmatprep.subr.mxu0 0.0
    %818 = vmatpush1.msra.mxu0 0.0
    %819 = vmatprep.subr.mxu0 0.0
    %820 = vmatpush1.msra.mxu0 0.0
    %821 = vmatprep.subr.mxu0 0.0
    %822 = vmatpush1.msra.mxu0 0.0
    %823 = vmatprep.subr.mxu0 0.0
    %824 = vmatpush1.msra.mxu0 0.0
    %825 = vmatprep.subr.mxu0 0.0
    %826 = vmatpush1.msra.mxu0 0.0
    %827 = vmatprep.subr.mxu0 0.0
    %828 = vmatpush1.msra.mxu0 0.0
    %829 = vmatprep.subr.mxu0 0.0
    %830 = vmatpush1.msra.mxu0 0.0
    %831 = vmatprep.subr.mxu0 0.0
    %832 = vmatpush1.msra.mxu0 0.0
    %833 = vmatprep.subr.mxu0 0.0
    %834 = vmatpush1.msra.mxu0 0.0
    %835 = vmatprep.subr.mxu0 0.0
    %836 = vmatpush1.msra.mxu0 0.0
    %837 = vmatprep.subr.mxu0 0.0
    %838 = vmatpush1.msra.mxu0 0.0
    %839 = vmatprep.subr.mxu0 0.0
    %840 = vmatpush1.msra.mxu0 0.0
    %841 = vmatprep.subr.mxu0 0.0
    %842 = vmatpush1.msra.mxu0 0.0
    %843 = vmatprep.subr.mxu0 0.0
    %844 = vmatpush1.msra.mxu0 0.0
    %845 = vmatprep.subr.mxu0 0.0
    %846 = vmatpush1.msra.mxu0 0.0
    %847 = vmatprep.subr.mxu0 0.0
    %848 = vmatpush1.msra.mxu0 0.0
    %849 = vmatprep.subr.mxu0 0.0
    %850 = vmatpush1.msra.mxu0 0.0
    %851 = vmatprep.subr.mxu0 0.0
    %852 = vmatpush1.msra.mxu0 0.0
    %853 = vmatprep.subr.mxu0 0.0
    %854 = vmatpush1.msra.mxu0 0.0
    %855 = vmatprep.subr.mxu0 0.0
    %856 = vmatpush1.msra.mxu0 0.0
    %857 = vmatprep.subr.mxu0 0.0
    %858 = vmatpush1.msra.mxu0 0.0
    %859 = vmatprep.subr.mxu0 0.0
    %860 = vmatpush1.msra.mxu0 0.0
    %861 = vmatprep.subr.mxu0 0.0
    %862 = vmatpush1.msra.mxu0 0.0
    %863 = vmatprep.mubr.f32.mxu0 0.0
    %v864 = vand.u32 %v543, 4294901760
    %v865 = vsub.f32 %v543, %v864
    %v866 = vand.u32 %v865, 4294901760
    %867 = vmatmul.mubr.f32.gmra.mrb[0].mxu0 %v866
    %v868 = vpop.f32.mrb[0].mxu0
    %v869 = vadd.f32 %v792, %v868
    %v870 = vpop.f32.mrb[0].mxu0
    %871 = vdwg.mxu0
    %872 = vmatprep.subr.mxu0 0.0
    %v873 = vand.u32 %v530, 4294901760
    %v874 = vsub.f32 %v530, %v873
    %v875 = vand.u32 %v874, 4294901760
    %876 = vmatpush1.msra.mxu0 %v875
    %877 = vmatprep.subr.mxu0 0.0
    %v878 = vand.u32 %v531, 4294901760
    %v879 = vsub.f32 %v531, %v878
    %v880 = vand.u32 %v879, 4294901760
    %881 = vmatpush1.msra.mxu0 %v880
    %882 = vmatprep.subr.mxu0 0.0
    %v883 = vand.u32 %v532, 4294901760
    %v884 = vsub.f32 %v532, %v883
    %v885 = vand.u32 %v884, 4294901760
    %886 = vmatpush1.msra.mxu0 %v885
    %887 = vmatprep.subr.mxu0 0.0
    %v888 = vand.u32 %v533, 4294901760
    %v889 = vsub.f32 %v533, %v888
    %v890 = vand.u32 %v889, 4294901760
    %891 = vmatpush1.msra.mxu0 %v890
    %892 = vmatprep.subr.mxu0 0.0
    %893 = vmatpush1.msra.mxu0 0.0
    %894 = vmatprep.subr.mxu0 0.0
    %895 = vmatpush1.msra.mxu0 0.0
    %896 = vmatprep.subr.mxu0 0.0
    %897 = vmatpush1.msra.mxu0 0.0
    %898 = vmatprep.subr.mxu0 0.0
    %899 = vmatpush1.msra.mxu0 0.0
    %900 = vmatprep.subr.mxu0 0.0
    %901 = vmatpush1.msra.mxu0 0.0
    %902 = vmatprep.subr.mxu0 0.0
    %903 = vmatpush1.msra.mxu0 0.0
    %904 = vmatprep.subr.mxu0 0.0
    %905 = vmatpush1.msra.mxu0 0.0
    %906 = vmatprep.subr.mxu0 0.0
    %907 = vmatpush1.msra.mxu0 0.0
    %908 = vmatprep.subr.mxu0 0.0
    %909 = vmatpush1.msra.mxu0 0.0
    %910 = vmatprep.subr.mxu0 0.0
    %911 = vmatpush1.msra.mxu0 0.0
    %912 = vmatprep.subr.mxu0 0.0
    %913 = vmatpush1.msra.mxu0 0.0
    %914 = vmatprep.subr.mxu0 0.0
    %915 = vmatpush1.msra.mxu0 0.0
    %916 = vmatprep.subr.mxu0 0.0
    %917 = vmatpush1.msra.mxu0 0.0
    %918 = vmatprep.subr.mxu0 0.0
    %919 = vmatpush1.msra.mxu0 0.0
    %920 = vmatprep.subr.mxu0 0.0
    %921 = vmatpush1.msra.mxu0 0.0
    %922 = vmatprep.subr.mxu0 0.0
    %923 = vmatpush1.msra.mxu0 0.0
    %924 = vmatprep.subr.mxu0 0.0
    %925 = vmatpush1.msra.mxu0 0.0
    %926 = vmatprep.subr.mxu0 0.0
    %927 = vmatpush1.msra.mxu0 0.0
    %928 = vmatprep.subr.mxu0 0.0
    %929 = vmatpush1.msra.mxu0 0.0
    %930 = vmatprep.subr.mxu0 0.0
    %931 = vmatpush1.msra.mxu0 0.0
    %932 = vmatprep.subr.mxu0 0.0
    %933 = vmatpush1.msra.mxu0 0.0
    %934 = vmatprep.subr.mxu0 0.0
    %935 = vmatpush1.msra.mxu0 0.0
    %936 = vmatprep.subr.mxu0 0.0
    %937 = vmatpush1.msra.mxu0 0.0
    %938 = vmatprep.subr.mxu0 0.0
    %939 = vmatpush1.msra.mxu0 0.0
    %940 = vmatprep.subr.mxu0 0.0
    %941 = vmatpush1.msra.mxu0 0.0
    %942 = vmatprep.subr.mxu0 0.0
    %943 = vmatpush1.msra.mxu0 0.0
    %944 = vmatprep.subr.mxu0 0.0
    %945 = vmatpush1.msra.mxu0 0.0
    %946 = vmatprep.subr.mxu0 0.0
    %947 = vmatpush1.msra.mxu0 0.0
    %948 = vmatprep.mubr.f32.mxu0 0.0
    %v949 = vand.u32 %v543, 4294901760
    %950 = vmatmul.mubr.f32.gmra.mrb[0].mxu0 %v949
    %v951 = vpop.f32.mrb[0].mxu0
    %v952 = vadd.f32 %v869, %v951
    %v953 = vpop.f32.mrb[0].mxu0
    %954 = vdwg.mxu0
    %955 = vmatprep.subr.mxu0 0.0
    %v956 = vand.u32 %v530, 4294901760
    %957 = vmatpush1.msra.mxu0 %v956
    %958 = vmatprep.subr.mxu0 0.0
    %v959 = vand.u32 %v531, 4294901760
    %960 = vmatpush1.msra.mxu0 %v959
    %961 = vmatprep.subr.mxu0 0.0
    %v962 = vand.u32 %v532, 4294901760
    %963 = vmatpush1.msra.mxu0 %v962
    %964 = vmatprep.subr.mxu0 0.0
    %v965 = vand.u32 %v533, 4294901760
    %966 = vmatpush1.msra.mxu0 %v965
    %967 = vmatprep.subr.mxu0 0.0
    %968 = vmatpush1.msra.mxu0 0.0
    %969 = vmatprep.subr.mxu0 0.0
    %970 = vmatpush1.msra.mxu0 0.0
    %971 = vmatprep.subr.mxu0 0.0
    %972 = vmatpush1.msra.mxu0 0.0
    %973 = vmatprep.subr.mxu0 0.0
    %974 = vmatpush1.msra.mxu0 0.0
    %975 = vmatprep.subr.mxu0 0.0
    %976 = vmatpush1.msra.mxu0 0.0
    %977 = vmatprep.subr.mxu0 0.0
    %978 = vmatpush1.msra.mxu0 0.0
    %979 = vmatprep.subr.mxu0 0.0
    %980 = vmatpush1.msra.mxu0 0.0
    %981 = vmatprep.subr.mxu0 0.0
    %982 = vmatpush1.msra.mxu0 0.0
    %983 = vmatprep.subr.mxu0 0.0
    %984 = vmatpush1.msra.mxu0 0.0
    %985 = vmatprep.subr.mxu0 0.0
    %986 = vmatpush1.msra.mxu0 0.0
    %987 = vmatprep.subr.mxu0 0.0
    %988 = vmatpush1.msra.mxu0 0.0
    %989 = vmatprep.subr.mxu0 0.0
    %990 = vmatpush1.msra.mxu0 0.0
    %991 = vmatprep.subr.mxu0 0.0
    %992 = vmatpush1.msra.mxu0 0.0
    %993 = vmatprep.subr.mxu0 0.0
    %994 = vmatpush1.msra.mxu0 0.0
    %995 = vmatprep.subr.mxu0 0.0
    %996 = vmatpush1.msra.mxu0 0.0
    %997 = vmatprep.subr.mxu0 0.0
    %998 = vmatpush1.msra.mxu0 0.0
    %999 = vmatprep.subr.mxu0 0.0
    %1000 = vmatpush1.msra.mxu0 0.0
    %1001 = vmatprep.subr.mxu0 0.0
    %1002 = vmatpush1.msra.mxu0 0.0
    %1003 = vmatprep.subr.mxu0 0.0
    %1004 = vmatpush1.msra.mxu0 0.0
    %1005 = vmatprep.subr.mxu0 0.0
    %1006 = vmatpush1.msra.mxu0 0.0
    %1007 = vmatprep.subr.mxu0 0.0
    %1008 = vmatpush1.msra.mxu0 0.0
    %1009 = vmatprep.subr.mxu0 0.0
    %1010 = vmatpush1.msra.mxu0 0.0
    %1011 = vmatprep.subr.mxu0 0.0
    %1012 = vmatpush1.msra.mxu0 0.0
    %1013 = vmatprep.subr.mxu0 0.0
    %1014 = vmatpush1.msra.mxu0 0.0
    %1015 = vmatprep.subr.mxu0 0.0
    %1016 = vmatpush1.msra.mxu0 0.0
    %1017 = vmatprep.subr.mxu0 0.0
    %1018 = vmatpush1.msra.mxu0 0.0
    %1019 = vmatprep.subr.mxu0 0.0
    %1020 = vmatpush1.msra.mxu0 0.0
    %1021 = vmatprep.subr.mxu0 0.0
    %1022 = vmatpush1.msra.mxu0 0.0
    %1023 = vmatprep.mubr.f32.mxu0 0.0
    %v1024 = vand.u32 %v543, 4294901760
    %1025 = vmatmul.mubr.f32.gmra.mrb[0].mxu0 %v1024
    %v1026 = vpop.f32.mrb[0].mxu0
    %v1027 = vadd.f32 %v952, %v1026
    %v1028 = vpop.f32.mrb[0].mxu0
    %1029 = vdwg.mxu0
    %1031 = vrot.lane.b32.xlu0 %v1027, 112
    %v1032 = vpop.permute.xlu0 %1031
    %vm1033 = vcmask 130048
    %v1034 = vsel %vm1033, %v1027, 0
    %v1036 = vsel %vm1033, %v1032, 0
    %1038 = vmatprep.subr.mxu0 0.0
    %v1039 = vand.u32 %v1036, 4294901760
    %1040 = vmatpush1.xpose.msra.mxu0 %v1039
    %1041 = vmatprep.subr.mxu0 0.0
    %1042 = vmatpush1.xpose.msra.mxu0 0.0
    %1043 = vmatprep.subr.mxu0 0.0
    %1044 = vmatpush1.xpose.msra.mxu0 0.0
    %1045 = vmatprep.subr.mxu0 0.0
    %1046 = vmatpush1.xpose.msra.mxu0 0.0
    %1047 = vmatprep.subr.mxu0 0.0
    %1048 = vmatpush1.xpose.msra.mxu0 0.0
    %1049 = vmatprep.subr.mxu0 0.0
    %1050 = vmatpush1.xpose.msra.mxu0 0.0
    %1051 = vmatprep.subr.mxu0 0.0
    %1052 = vmatpush1.xpose.msra.mxu0 0.0
    %1053 = vmatprep.subr.mxu0 0.0
    %1054 = vmatpush1.xpose.msra.mxu0 0.0
    %1055 = vmatprep.subr.mxu0 0.0
    %1056 = vmatpush1.xpose.msra.mxu0 0.0
    %1057 = vmatprep.subr.mxu0 0.0
    %1058 = vmatpush1.xpose.msra.mxu0 0.0
    %1059 = vmatprep.subr.mxu0 0.0
    %1060 = vmatpush1.xpose.msra.mxu0 0.0
    %1061 = vmatprep.subr.mxu0 0.0
    %1062 = vmatpush1.xpose.msra.mxu0 0.0
    %1063 = vmatprep.subr.mxu0 0.0
    %1064 = vmatpush1.xpose.msra.mxu0 0.0
    %1065 = vmatprep.subr.mxu0 0.0
    %1066 = vmatpush1.xpose.msra.mxu0 0.0
    %1067 = vmatprep.subr.mxu0 0.0
    %1068 = vmatpush1.xpose.msra.mxu0 0.0
    %1069 = vmatprep.subr.mxu0 0.0
    %1070 = vmatpush1.xpose.msra.mxu0 0.0
    %1071 = vmatprep.subr.mxu0 0.0
    %1072 = vmatpush1.xpose.msra.mxu0 0.0
    %1073 = vmatprep.subr.mxu0 0.0
    %1074 = vmatpush1.xpose.msra.mxu0 0.0
    %1075 = vmatprep.subr.mxu0 0.0
    %1076 = vmatpush1.xpose.msra.mxu0 0.0
    %1077 = vmatprep.subr.mxu0 0.0
    %1078 = vmatpush1.xpose.msra.mxu0 0.0
    %1079 = vmatprep.subr.mxu0 0.0
    %1080 = vmatpush1.xpose.msra.mxu0 0.0
    %1081 = vmatprep.subr.mxu0 0.0
    %1082 = vmatpush1.xpose.msra.mxu0 0.0
    %1083 = vmatprep.subr.mxu0 0.0
    %1084 = vmatpush1.xpose.msra.mxu0 0.0
    %1085 = vmatprep.subr.mxu0 0.0
    %1086 = vmatpush1.xpose.msra.mxu0 0.0
    %1087 = vmatprep.subr.mxu0 0.0
    %1088 = vmatpush1.xpose.msra.mxu0 0.0
    %1089 = vmatprep.subr.mxu0 0.0
    %1090 = vmatpush1.xpose.msra.mxu0 0.0
    %1091 = vmatprep.subr.mxu0 0.0
    %1092 = vmatpush1.xpose.msra.mxu0 0.0
    %1093 = vmatprep.subr.mxu0 0.0
    %1094 = vmatpush1.xpose.msra.mxu0 0.0
    %1095 = vmatprep.subr.mxu0 0.0
    %1096 = vmatpush1.xpose.msra.mxu0 0.0
    %1097 = vmatprep.subr.mxu0 0.0
    %1098 = vmatpush1.xpose.msra.mxu0 0.0
    %1099 = vmatprep.subr.mxu0 0.0
    %1100 = vmatpush1.xpose.msra.mxu0 0.0
    %1101 = vmatprep.subr.mxu0 0.0
    %1102 = vmatpush1.xpose.msra.mxu0 0.0
    %1103 = vmatprep.mubr.f32.mxu0 0.0
    %v1104 = vand.u32 %v1034, 4294901760
    %v1105 = vsub.f32 %v1034, %v1104
    %v1106 = vand.u32 %v1105, 4294901760
    %v1107 = vsub.f32 %v1105, %v1106
    %v1108 = vand.u32 %v1107, 4294901760
    %1109 = vmatmul.mubr.f32.gmra.mrb[0].mxu0 %v1108
    %v1110 = vpop.f32.mrb[0].mxu0
    %v1111 = vadd.f32 0.0, %v1110
    %v1112 = vpop.f32.mrb[0].mxu0
    %1113 = vdwg.mxu0
    %1114 = vmatprep.subr.mxu0 0.0
    %v1115 = vand.u32 %v1036, 4294901760
    %v1116 = vsub.f32 %v1036, %v1115
    %v1117 = vand.u32 %v1116, 4294901760
    %v1118 = vsub.f32 %v1116, %v1117
    %v1119 = vand.u32 %v1118, 4294901760
    %1120 = vmatpush1.xpose.msra.mxu0 %v1119
    %1121 = vmatprep.subr.mxu0 0.0
    %1122 = vmatpush1.xpose.msra.mxu0 0.0
    %1123 = vmatprep.subr.mxu0 0.0
    %1124 = vmatpush1.xpose.msra.mxu0 0.0
    %1125 = vmatprep.subr.mxu0 0.0
    %1126 = vmatpush1.xpose.msra.mxu0 0.0
    %1127 = vmatprep.subr.mxu0 0.0
    %1128 = vmatpush1.xpose.msra.mxu0 0.0
    %1129 = vmatprep.subr.mxu0 0.0
    %1130 = vmatpush1.xpose.msra.mxu0 0.0
    %1131 = vmatprep.subr.mxu0 0.0
    %1132 = vmatpush1.xpose.msra.mxu0 0.0
    %1133 = vmatprep.subr.mxu0 0.0
    %1134 = vmatpush1.xpose.msra.mxu0 0.0
    %1135 = vmatprep.subr.mxu0 0.0
    %1136 = vmatpush1.xpose.msra.mxu0 0.0
    %1137 = vmatprep.subr.mxu0 0.0
    %1138 = vmatpush1.xpose.msra.mxu0 0.0
    %1139 = vmatprep.subr.mxu0 0.0
    %1140 = vmatpush1.xpose.msra.mxu0 0.0
    %1141 = vmatprep.subr.mxu0 0.0
    %1142 = vmatpush1.xpose.msra.mxu0 0.0
    %1143 = vmatprep.subr.mxu0 0.0
    %1144 = vmatpush1.xpose.msra.mxu0 0.0
    %1145 = vmatprep.subr.mxu0 0.0
    %1146 = vmatpush1.xpose.msra.mxu0 0.0
    %1147 = vmatprep.subr.mxu0 0.0
    %1148 = vmatpush1.xpose.msra.mxu0 0.0
    %1149 = vmatprep.subr.mxu0 0.0
    %1150 = vmatpush1.xpose.msra.mxu0 0.0
    %1151 = vmatprep.subr.mxu0 0.0
    %1152 = vmatpush1.xpose.msra.mxu0 0.0
    %1153 = vmatprep.subr.mxu0 0.0
    %1154 = vmatpush1.xpose.msra.mxu0 0.0
    %1155 = vmatprep.subr.mxu0 0.0
    %1156 = vmatpush1.xpose.msra.mxu0 0.0
    %1157 = vmatprep.subr.mxu0 0.0
    %1158 = vmatpush1.xpose.msra.mxu0 0.0
    %1159 = vmatprep.subr.mxu0 0.0
    %1160 = vmatpush1.xpose.msra.mxu0 0.0
    %1161 = vmatprep.subr.mxu0 0.0
    %1162 = vmatpush1.xpose.msra.mxu0 0.0
    %1163 = vmatprep.subr.mxu0 0.0
    %1164 = vmatpush1.xpose.msra.mxu0 0.0
    %1165 = vmatprep.subr.mxu0 0.0
    %1166 = vmatpush1.xpose.msra.mxu0 0.0
    %1167 = vmatprep.subr.mxu0 0.0
    %1168 = vmatpush1.xpose.msra.mxu0 0.0
    %1169 = vmatprep.subr.mxu0 0.0
    %1170 = vmatpush1.xpose.msra.mxu0 0.0
    %1171 = vmatprep.subr.mxu0 0.0
    %1172 = vmatpush1.xpose.msra.mxu0 0.0
    %1173 = vmatprep.subr.mxu0 0.0
    %1174 = vmatpush1.xpose.msra.mxu0 0.0
    %1175 = vmatprep.subr.mxu0 0.0
    %1176 = vmatpush1.xpose.msra.mxu0 0.0
    %1177 = vmatprep.subr.mxu0 0.0
    %1178 = vmatpush1.xpose.msra.mxu0 0.0
    %1179 = vmatprep.subr.mxu0 0.0
    %1180 = vmatpush1.xpose.msra.mxu0 0.0
    %1181 = vmatprep.subr.mxu0 0.0
    %1182 = vmatpush1.xpose.msra.mxu0 0.0
    %1183 = vmatprep.mubr.f32.mxu0 0.0
    %v1184 = vand.u32 %v1034, 4294901760
    %1185 = vmatmul.mubr.f32.gmra.mrb[0].mxu0 %v1184
    %v1186 = vpop.f32.mrb[0].mxu0
    %v1187 = vadd.f32 %v1111, %v1186
    %v1188 = vpop.f32.mrb[0].mxu0
    %1189 = vdwg.mxu0
    %1190 = vmatprep.subr.mxu0 0.0
    %v1191 = vand.u32 %v1036, 4294901760
    %v1192 = vsub.f32 %v1036, %v1191
    %1193 = vmatpush1.xpose.msra.mxu0 %v1192
    %1194 = vmatprep.subr.mxu0 0.0
    %1195 = vmatpush1.xpose.msra.mxu0 0.0
    %1196 = vmatprep.subr.mxu0 0.0
    %1197 = vmatpush1.xpose.msra.mxu0 0.0
    %1198 = vmatprep.subr.mxu0 0.0
    %1199 = vmatpush1.xpose.msra.mxu0 0.0
    %1200 = vmatprep.subr.mxu0 0.0
    %1201 = vmatpush1.xpose.msra.mxu0 0.0
    %1202 = vmatprep.subr.mxu0 0.0
    %1203 = vmatpush1.xpose.msra.mxu0 0.0
    %1204 = vmatprep.subr.mxu0 0.0
    %1205 = vmatpush1.xpose.msra.mxu0 0.0
    %1206 = vmatprep.subr.mxu0 0.0
    %1207 = vmatpush1.xpose.msra.mxu0 0.0
    %1208 = vmatprep.subr.mxu0 0.0
    %1209 = vmatpush1.xpose.msra.mxu0 0.0
    %1210 = vmatprep.subr.mxu0 0.0
    %1211 = vmatpush1.xpose.msra.mxu0 0.0
    %1212 = vmatprep.subr.mxu0 0.0
    %1213 = vmatpush1.xpose.msra.mxu0 0.0
    %1214 = vmatprep.subr.mxu0 0.0
    %1215 = vmatpush1.xpose.msra.mxu0 0.0
    %1216 = vmatprep.subr.mxu0 0.0
    %1217 = vmatpush1.xpose.msra.mxu0 0.0
    %1218 = vmatprep.subr.mxu0 0.0
    %1219 = vmatpush1.xpose.msra.mxu0 0.0
    %1220 = vmatprep.subr.mxu0 0.0
    %1221 = vmatpush1.xpose.msra.mxu0 0.0
    %1222 = vmatprep.subr.mxu0 0.0
    %1223 = vmatpush1.xpose.msra.mxu0 0.0
    %1224 = vmatprep.subr.mxu0 0.0
    %1225 = vmatpush1.xpose.msra.mxu0 0.0
    %1226 = vmatprep.subr.mxu0 0.0
    %1227 = vmatpush1.xpose.msra.mxu0 0.0
    %1228 = vmatprep.subr.mxu0 0.0
    %1229 = vmatpush1.xpose.msra.mxu0 0.0
    %1230 = vmatprep.subr.mxu0 0.0
    %1231 = vmatpush1.xpose.msra.mxu0 0.0
    %1232 = vmatprep.subr.mxu0 0.0
    %1233 = vmatpush1.xpose.msra.mxu0 0.0
    %1234 = vmatprep.subr.mxu0 0.0
    %1235 = vmatpush1.xpose.msra.mxu0 0.0
    %1236 = vmatprep.subr.mxu0 0.0
    %1237 = vmatpush1.xpose.msra.mxu0 0.0
    %1238 = vmatprep.subr.mxu0 0.0
    %1239 = vmatpush1.xpose.msra.mxu0 0.0
    %1240 = vmatprep.subr.mxu0 0.0
    %1241 = vmatpush1.xpose.msra.mxu0 0.0
    %1242 = vmatprep.subr.mxu0 0.0
    %1243 = vmatpush1.xpose.msra.mxu0 0.0
    %1244 = vmatprep.subr.mxu0 0.0
    %1245 = vmatpush1.xpose.msra.mxu0 0.0
    %1246 = vmatprep.subr.mxu0 0.0
    %1247 = vmatpush1.xpose.msra.mxu0 0.0
    %1248 = vmatprep.subr.mxu0 0.0
    %1249 = vmatpush1.xpose.msra.mxu0 0.0
    %1250 = vmatprep.subr.mxu0 0.0
    %1251 = vmatpush1.xpose.msra.mxu0 0.0
    %1252 = vmatprep.subr.mxu0 0.0
    %1253 = vmatpush1.xpose.msra.mxu0 0.0
    %1254 = vmatprep.subr.mxu0 0.0
    %1255 = vmatpush1.xpose.msra.mxu0 0.0
    %1256 = vmatprep.mubr.f32.mxu0 0.0
    %v1257 = vand.u32 %v1034, 4294901760
    %v1258 = vsub.f32 %v1034, %v1257
    %1259 = vmatmul.mubr.f32.gmra.mrb[0].mxu0 %v1258
    %v1260 = vpop.f32.mrb[0].mxu0
    %v1261 = vadd.f32 %v1187, %v1260
    %v1262 = vpop.f32.mrb[0].mxu0
    %1263 = vdwg.mxu0
    %1264 = vmatprep.subr.mxu0 0.0
    %v1265 = vand.u32 %v1036, 4294901760
    %1266 = vmatpush1.xpose.msra.mxu0 %v1265
    %1267 = vmatprep.subr.mxu0 0.0
    %1268 = vmatpush1.xpose.msra.mxu0 0.0
    %1269 = vmatprep.subr.mxu0 0.0
    %1270 = vmatpush1.xpose.msra.mxu0 0.0
    %1271 = vmatprep.subr.mxu0 0.0
    %1272 = vmatpush1.xpose.msra.mxu0 0.0
    %1273 = vmatprep.subr.mxu0 0.0
    %1274 = vmatpush1.xpose.msra.mxu0 0.0
    %1275 = vmatprep.subr.mxu0 0.0
    %1276 = vmatpush1.xpose.msra.mxu0 0.0
    %1277 = vmatprep.subr.mxu0 0.0
    %1278 = vmatpush1.xpose.msra.mxu0 0.0
    %1279 = vmatprep.subr.mxu0 0.0
    %1280 = vmatpush1.xpose.msra.mxu0 0.0
    %1281 = vmatprep.subr.mxu0 0.0
    %1282 = vmatpush1.xpose.msra.mxu0 0.0
    %1283 = vmatprep.subr.mxu0 0.0
    %1284 = vmatpush1.xpose.msra.mxu0 0.0
    %1285 = vmatprep.subr.mxu0 0.0
    %1286 = vmatpush1.xpose.msra.mxu0 0.0
    %1287 = vmatprep.subr.mxu0 0.0
    %1288 = vmatpush1.xpose.msra.mxu0 0.0
    %1289 = vmatprep.subr.mxu0 0.0
    %1290 = vmatpush1.xpose.msra.mxu0 0.0
    %1291 = vmatprep.subr.mxu0 0.0
    %1292 = vmatpush1.xpose.msra.mxu0 0.0
    %1293 = vmatprep.subr.mxu0 0.0
    %1294 = vmatpush1.xpose.msra.mxu0 0.0
    %1295 = vmatprep.subr.mxu0 0.0
    %1296 = vmatpush1.xpose.msra.mxu0 0.0
    %1297 = vmatprep.subr.mxu0 0.0
    %1298 = vmatpush1.xpose.msra.mxu0 0.0
    %1299 = vmatprep.subr.mxu0 0.0
    %1300 = vmatpush1.xpose.msra.mxu0 0.0
    %1301 = vmatprep.subr.mxu0 0.0
    %1302 = vmatpush1.xpose.msra.mxu0 0.0
    %1303 = vmatprep.subr.mxu0 0.0
    %1304 = vmatpush1.xpose.msra.mxu0 0.0
    %1305 = vmatprep.subr.mxu0 0.0
    %1306 = vmatpush1.xpose.msra.mxu0 0.0
    %1307 = vmatprep.subr.mxu0 0.0
    %1308 = vmatpush1.xpose.msra.mxu0 0.0
    %1309 = vmatprep.subr.mxu0 0.0
    %1310 = vmatpush1.xpose.msra.mxu0 0.0
    %1311 = vmatprep.subr.mxu0 0.0
    %1312 = vmatpush1.xpose.msra.mxu0 0.0
    %1313 = vmatprep.subr.mxu0 0.0
    %1314 = vmatpush1.xpose.msra.mxu0 0.0
    %1315 = vmatprep.subr.mxu0 0.0
    %1316 = vmatpush1.xpose.msra.mxu0 0.0
    %1317 = vmatprep.subr.mxu0 0.0
    %1318 = vmatpush1.xpose.msra.mxu0 0.0
    %1319 = vmatprep.subr.mxu0 0.0
    %1320 = vmatpush1.xpose.msra.mxu0 0.0
    %1321 = vmatprep.subr.mxu0 0.0
    %1322 = vmatpush1.xpose.msra.mxu0 0.0
    %1323 = vmatprep.subr.mxu0 0.0
    %1324 = vmatpush1.xpose.msra.mxu0 0.0
    %1325 = vmatprep.subr.mxu0 0.0
    %1326 = vmatpush1.xpose.msra.mxu0 0.0
    %1327 = vmatprep.subr.mxu0 0.0
    %1328 = vmatpush1.xpose.msra.mxu0 0.0
    %1329 = vmatprep.mubr.f32.mxu0 0.0
    %v1330 = vand.u32 %v1034, 4294901760
    %v1331 = vsub.f32 %v1034, %v1330
    %v1332 = vand.u32 %v1331, 4294901760
    %1333 = vmatmul.mubr.f32.gmra.mrb[0].mxu0 %v1332
    %v1334 = vpop.f32.mrb[0].mxu0
    %v1335 = vadd.f32 %v1261, %v1334
    %v1336 = vpop.f32.mrb[0].mxu0
    %1337 = vdwg.mxu0
    %1338 = vmatprep.subr.mxu0 0.0
    %v1339 = vand.u32 %v1036, 4294901760
    %v1340 = vsub.f32 %v1036, %v1339
    %v1341 = vand.u32 %v1340, 4294901760
    %1342 = vmatpush1.xpose.msra.mxu0 %v1341
    %1343 = vmatprep.subr.mxu0 0.0
    %1344 = vmatpush1.xpose.msra.mxu0 0.0
    %1345 = vmatprep.subr.mxu0 0.0
    %1346 = vmatpush1.xpose.msra.mxu0 0.0
    %1347 = vmatprep.subr.mxu0 0.0
    %1348 = vmatpush1.xpose.msra.mxu0 0.0
    %1349 = vmatprep.subr.mxu0 0.0
    %1350 = vmatpush1.xpose.msra.mxu0 0.0
    %1351 = vmatprep.subr.mxu0 0.0
    %1352 = vmatpush1.xpose.msra.mxu0 0.0
    %1353 = vmatprep.subr.mxu0 0.0
    %1354 = vmatpush1.xpose.msra.mxu0 0.0
    %1355 = vmatprep.subr.mxu0 0.0
    %1356 = vmatpush1.xpose.msra.mxu0 0.0
    %1357 = vmatprep.subr.mxu0 0.0
    %1358 = vmatpush1.xpose.msra.mxu0 0.0
    %1359 = vmatprep.subr.mxu0 0.0
    %1360 = vmatpush1.xpose.msra.mxu0 0.0
    %1361 = vmatprep.subr.mxu0 0.0
    %1362 = vmatpush1.xpose.msra.mxu0 0.0
    %1363 = vmatprep.subr.mxu0 0.0
    %1364 = vmatpush1.xpose.msra.mxu0 0.0
    %1365 = vmatprep.subr.mxu0 0.0
    %1366 = vmatpush1.xpose.msra.mxu0 0.0
    %1367 = vmatprep.subr.mxu0 0.0
    %1368 = vmatpush1.xpose.msra.mxu0 0.0
    %1369 = vmatprep.subr.mxu0 0.0
    %1370 = vmatpush1.xpose.msra.mxu0 0.0
    %1371 = vmatprep.subr.mxu0 0.0
    %1372 = vmatpush1.xpose.msra.mxu0 0.0
    %1373 = vmatprep.subr.mxu0 0.0
    %1374 = vmatpush1.xpose.msra.mxu0 0.0
    %1375 = vmatprep.subr.mxu0 0.0
    %1376 = vmatpush1.xpose.msra.mxu0 0.0
    %1377 = vmatprep.subr.mxu0 0.0
    %1378 = vmatpush1.xpose.msra.mxu0 0.0
    %1379 = vmatprep.subr.mxu0 0.0
    %1380 = vmatpush1.xpose.msra.mxu0 0.0
    %1381 = vmatprep.subr.mxu0 0.0
    %1382 = vmatpush1.xpose.msra.mxu0 0.0
    %1383 = vmatprep.subr.mxu0 0.0
    %1384 = vmatpush1.xpose.msra.mxu0 0.0
    %1385 = vmatprep.subr.mxu0 0.0
    %1386 = vmatpush1.xpose.msra.mxu0 0.0
    %1387 = vmatprep.subr.mxu0 0.0
    %1388 = vmatpush1.xpose.msra.mxu0 0.0
    %1389 = vmatprep.subr.mxu0 0.0
    %1390 = vmatpush1.xpose.msra.mxu0 0.0
    %1391 = vmatprep.subr.mxu0 0.0
    %1392 = vmatpush1.xpose.msra.mxu0 0.0
    %1393 = vmatprep.subr.mxu0 0.0
    %1394 = vmatpush1.xpose.msra.mxu0 0.0
    %1395 = vmatprep.subr.mxu0 0.0
    %1396 = vmatpush1.xpose.msra.mxu0 0.0
    %1397 = vmatprep.subr.mxu0 0.0
    %1398 = vmatpush1.xpose.msra.mxu0 0.0
    %1399 = vmatprep.subr.mxu0 0.0
    %1400 = vmatpush1.xpose.msra.mxu0 0.0
    %1401 = vmatprep.subr.mxu0 0.0
    %1402 = vmatpush1.xpose.msra.mxu0 0.0
    %1403 = vmatprep.subr.mxu0 0.0
    %1404 = vmatpush1.xpose.msra.mxu0 0.0
    %1405 = vmatprep.mubr.f32.mxu0 0.0
    %v1406 = vand.u32 %v1034, 4294901760
    %1407 = vmatmul.mubr.f32.gmra.mrb[0].mxu0 %v1406
    %v1408 = vpop.f32.mrb[0].mxu0
    %v1409 = vadd.f32 %v1335, %v1408
    %v1410 = vpop.f32.mrb[0].mxu0
    %1411 = vdwg.mxu0
    %1412 = vmatprep.subr.mxu0 0.0
    %v1413 = vand.u32 %v1036, 4294901760
    %1414 = vmatpush1.xpose.msra.mxu0 %v1413
    %1415 = vmatprep.subr.mxu0 0.0
    %1416 = vmatpush1.xpose.msra.mxu0 0.0
    %1417 = vmatprep.subr.mxu0 0.0
    %1418 = vmatpush1.xpose.msra.mxu0 0.0
    %1419 = vmatprep.subr.mxu0 0.0
    %1420 = vmatpush1.xpose.msra.mxu0 0.0
    %1421 = vmatprep.subr.mxu0 0.0
    %1422 = vmatpush1.xpose.msra.mxu0 0.0
    %1423 = vmatprep.subr.mxu0 0.0
    %1424 = vmatpush1.xpose.msra.mxu0 0.0
    %1425 = vmatprep.subr.mxu0 0.0
    %1426 = vmatpush1.xpose.msra.mxu0 0.0
    %1427 = vmatprep.subr.mxu0 0.0
    %1428 = vmatpush1.xpose.msra.mxu0 0.0
    %1429 = vmatprep.subr.mxu0 0.0
    %1430 = vmatpush1.xpose.msra.mxu0 0.0
    %1431 = vmatprep.subr.mxu0 0.0
    %1432 = vmatpush1.xpose.msra.mxu0 0.0
    %1433 = vmatprep.subr.mxu0 0.0
    %1434 = vmatpush1.xpose.msra.mxu0 0.0
    %1435 = vmatprep.subr.mxu0 0.0
    %1436 = vmatpush1.xpose.msra.mxu0 0.0
    %1437 = vmatprep.subr.mxu0 0.0
    %1438 = vmatpush1.xpose.msra.mxu0 0.0
    %1439 = vmatprep.subr.mxu0 0.0
    %1440 = vmatpush1.xpose.msra.mxu0 0.0
    %1441 = vmatprep.subr.mxu0 0.0
    %1442 = vmatpush1.xpose.msra.mxu0 0.0
    %1443 = vmatprep.subr.mxu0 0.0
    %1444 = vmatpush1.xpose.msra.mxu0 0.0
    %1445 = vmatprep.subr.mxu0 0.0
    %1446 = vmatpush1.xpose.msra.mxu0 0.0
    %1447 = vmatprep.subr.mxu0 0.0
    %1448 = vmatpush1.xpose.msra.mxu0 0.0
    %1449 = vmatprep.subr.mxu0 0.0
    %1450 = vmatpush1.xpose.msra.mxu0 0.0
    %1451 = vmatprep.subr.mxu0 0.0
    %1452 = vmatpush1.xpose.msra.mxu0 0.0
    %1453 = vmatprep.subr.mxu0 0.0
    %1454 = vmatpush1.xpose.msra.mxu0 0.0
    %1455 = vmatprep.subr.mxu0 0.0
    %1456 = vmatpush1.xpose.msra.mxu0 0.0
    %1457 = vmatprep.subr.mxu0 0.0
    %1458 = vmatpush1.xpose.msra.mxu0 0.0
    %1459 = vmatprep.subr.mxu0 0.0
    %1460 = vmatpush1.xpose.msra.mxu0 0.0
    %1461 = vmatprep.subr.mxu0 0.0
    %1462 = vmatpush1.xpose.msra.mxu0 0.0
    %1463 = vmatprep.subr.mxu0 0.0
    %1464 = vmatpush1.xpose.msra.mxu0 0.0
    %1465 = vmatprep.subr.mxu0 0.0
    %1466 = vmatpush1.xpose.msra.mxu0 0.0
    %1467 = vmatprep.subr.mxu0 0.0
    %1468 = vmatpush1.xpose.msra.mxu0 0.0
    %1469 = vmatprep.subr.mxu0 0.0
    %1470 = vmatpush1.xpose.msra.mxu0 0.0
    %1471 = vmatprep.subr.mxu0 0.0
    %1472 = vmatpush1.xpose.msra.mxu0 0.0
    %1473 = vmatprep.subr.mxu0 0.0
    %1474 = vmatpush1.xpose.msra.mxu0 0.0
    %1475 = vmatprep.subr.mxu0 0.0
    %1476 = vmatpush1.xpose.msra.mxu0 0.0
    %1477 = vmatprep.mubr.f32.mxu0 0.0
    %v1478 = vand.u32 %v1034, 4294901760
    %1479 = vmatmul.mubr.f32.gmra.mrb[0].mxu0 %v1478
    %v1480 = vpop.f32.mrb[0].mxu0
    %v1481 = vadd.f32 %v1409, %v1480
    %v1482 = vpop.f32.mrb[0].mxu0
    %1483 = vdwg.mxu0
    %v1484 = vsel %vm80, %v1481, -inf
    %1485 = vmax.xlane.f32.xlu0 %v1484
    %v1486 = vpop.xlane.xlu0 %1485
    %v1487 = vsub.f32 %v1481, %v1486
    %v1488 = vmul.f32 %v1487, 1.442695
    %v1489 = vpow.pop %v1488
    %v1490 = vsel %vm80, %v1489, 0.0
    %1491 = vadd.xlane.f32.xlu0 %v1490
    %v1492 = vpop.xlane.xlu0 %1491
    %v1493 = vrcp.pop %v1492
    %v1494 = vmul.f32 %v1489, %v1493
    %1495 = vst.msk [vmem:[#allocation10] sm:$0xff] %vm80, %v1494
    %1496 = vrot.lane.b32.xlu0 %v1027, 96
    %v1497 = vpop.permute.xlu0 %1496
    %v1500 = vsel %vm80, %v1494, 0
    %1502 = vmatprep.subr.mxu0 0.0
    %v1503 = vand.u32 %v1497, 4294901760
    %1504 = vmatpush1.msra.mxu0 %v1503
    %1505 = vmatprep.subr.mxu0 0.0
    %1506 = vmatpush1.msra.mxu0 0.0
    %1507 = vmatprep.subr.mxu0 0.0
    %1508 = vmatpush1.msra.mxu0 0.0
    %1509 = vmatprep.subr.mxu0 0.0
    %1510 = vmatpush1.msra.mxu0 0.0
    %1511 = vmatprep.subr.mxu0 0.0
    %1512 = vmatpush1.msra.mxu0 0.0
    %1513 = vmatprep.subr.mxu0 0.0
    %1514 = vmatpush1.msra.mxu0 0.0
    %1515 = vmatprep.subr.mxu0 0.0
    %1516 = vmatpush1.msra.mxu0 0.0
    %1517 = vmatprep.subr.mxu0 0.0
    %1518 = vmatpush1.msra.mxu0 0.0
    %1519 = vmatprep.subr.mxu0 0.0
    %1520 = vmatpush1.msra.mxu0 0.0
    %1521 = vmatprep.subr.mxu0 0.0
    %1522 = vmatpush1.msra.mxu0 0.0
    %1523 = vmatprep.subr.mxu0 0.0
    %1524 = vmatpush1.msra.mxu0 0.0
    %1525 = vmatprep.subr.mxu0 0.0
    %1526 = vmatpush1.msra.mxu0 0.0
    %1527 = vmatprep.subr.mxu0 0.0
    %1528 = vmatpush1.msra.mxu0 0.0
    %1529 = vmatprep.subr.mxu0 0.0
    %1530 = vmatpush1.msra.mxu0 0.0
    %1531 = vmatprep.subr.mxu0 0.0
    %1532 = vmatpush1.msra.mxu0 0.0
    %1533 = vmatprep.subr.mxu0 0.0
    %1534 = vmatpush1.msra.mxu0 0.0
    %1535 = vmatprep.subr.mxu0 0.0
    %1536 = vmatpush1.msra.mxu0 0.0
    %1537 = vmatprep.subr.mxu0 0.0
    %1538 = vmatpush1.msra.mxu0 0.0
    %1539 = vmatprep.subr.mxu0 0.0
    %1540 = vmatpush1.msra.mxu0 0.0
    %1541 = vmatprep.subr.mxu0 0.0
    %1542 = vmatpush1.msra.mxu0 0.0
    %1543 = vmatprep.subr.mxu0 0.0
    %1544 = vmatpush1.msra.mxu0 0.0
    %1545 = vmatprep.subr.mxu0 0.0
    %1546 = vmatpush1.msra.mxu0 0.0
    %1547 = vmatprep.subr.mxu0 0.0
    %1548 = vmatpush1.msra.mxu0 0.0
    %1549 = vmatprep.subr.mxu0 0.0
    %1550 = vmatpush1.msra.mxu0 0.0
    %1551 = vmatprep.subr.mxu0 0.0
    %1552 = vmatpush1.msra.mxu0 0.0
    %1553 = vmatprep.subr.mxu0 0.0
    %1554 = vmatpush1.msra.mxu0 0.0
    %1555 = vmatprep.subr.mxu0 0.0
    %1556 = vmatpush1.msra.mxu0 0.0
    %1557 = vmatprep.subr.mxu0 0.0
    %1558 = vmatpush1.msra.mxu0 0.0
    %1559 = vmatprep.subr.mxu0 0.0
    %1560 = vmatpush1.msra.mxu0 0.0
    %1561 = vmatprep.subr.mxu0 0.0
    %1562 = vmatpush1.msra.mxu0 0.0
    %1563 = vmatprep.subr.mxu0 0.0
    %1564 = vmatpush1.msra.mxu0 0.0
    %1565 = vmatprep.subr.mxu0 0.0
    %1566 = vmatpush1.msra.mxu0 0.0
    %1567 = vmatprep.mubr.f32.mxu0 0.0
    %v1568 = vand.u32 %v1500, 4294901760
    %v1569 = vsub.f32 %v1500, %v1568
    %v1570 = vand.u32 %v1569, 4294901760
    %v1571 = vsub.f32 %v1569, %v1570
    %v1572 = vand.u32 %v1571, 4294901760
    %1573 = vmatmul.mubr.f32.gmra.mrb[0].mxu0 %v1572
    %v1574 = vpop.f32.mrb[0].mxu0
    %v1575 = vadd.f32 0.0, %v1574
    %v1576 = vpop.f32.mrb[0].mxu0
    %1577 = vdwg.mxu0
    %1578 = vmatprep.subr.mxu0 0.0
    %v1579 = vand.u32 %v1497, 4294901760
    %v1580 = vsub.f32 %v1497, %v1579
    %v1581 = vand.u32 %v1580, 4294901760
    %v1582 = vsub.f32 %v1580, %v1581
    %v1583 = vand.u32 %v1582, 4294901760
    %1584 = vmatpush1.msra.mxu0 %v1583
    %1585 = vmatprep.subr.mxu0 0.0
    %1586 = vmatpush1.msra.mxu0 0.0
    %1587 = vmatprep.subr.mxu0 0.0
    %1588 = vmatpush1.msra.mxu0 0.0
    %1589 = vmatprep.subr.mxu0 0.0
    %1590 = vmatpush1.msra.mxu0 0.0
    %1591 = vmatprep.subr.mxu0 0.0
    %1592 = vmatpush1.msra.mxu0 0.0
    %1593 = vmatprep.subr.mxu0 0.0
    %1594 = vmatpush1.msra.mxu0 0.0
    %1595 = vmatprep.subr.mxu0 0.0
    %1596 = vmatpush1.msra.mxu0 0.0
    %1597 = vmatprep.subr.mxu0 0.0
    %1598 = vmatpush1.msra.mxu0 0.0
    %1599 = vmatprep.subr.mxu0 0.0
    %1600 = vmatpush1.msra.mxu0 0.0
    %1601 = vmatprep.subr.mxu0 0.0
    %1602 = vmatpush1.msra.mxu0 0.0
    %1603 = vmatprep.subr.mxu0 0.0
    %1604 = vmatpush1.msra.mxu0 0.0
    %1605 = vmatprep.subr.mxu0 0.0
    %1606 = vmatpush1.msra.mxu0 0.0
    %1607 = vmatprep.subr.mxu0 0.0
    %1608 = vmatpush1.msra.mxu0 0.0
    %1609 = vmatprep.subr.mxu0 0.0
    %1610 = vmatpush1.msra.mxu0 0.0
    %1611 = vmatprep.subr.mxu0 0.0
    %1612 = vmatpush1.msra.mxu0 0.0
    %1613 = vmatprep.subr.mxu0 0.0
    %1614 = vmatpush1.msra.mxu0 0.0
    %1615 = vmatprep.subr.mxu0 0.0
    %1616 = vmatpush1.msra.mxu0 0.0
    %1617 = vmatprep.subr.mxu0 0.0
    %1618 = vmatpush1.msra.mxu0 0.0
    %1619 = vmatprep.subr.mxu0 0.0
    %1620 = vmatpush1.msra.mxu0 0.0
    %1621 = vmatprep.subr.mxu0 0.0
    %1622 = vmatpush1.msra.mxu0 0.0
    %1623 = vmatprep.subr.mxu0 0.0
    %1624 = vmatpush1.msra.mxu0 0.0
    %1625 = vmatprep.subr.mxu0 0.0
    %1626 = vmatpush1.msra.mxu0 0.0
    %1627 = vmatprep.subr.mxu0 0.0
    %1628 = vmatpush1.msra.mxu0 0.0
    %1629 = vmatprep.subr.mxu0 0.0
    %1630 = vmatpush1.msra.mxu0 0.0
    %1631 = vmatprep.subr.mxu0 0.0
    %1632 = vmatpush1.msra.mxu0 0.0
    %1633 = vmatprep.subr.mxu0 0.0
    %1634 = vmatpush1.msra.mxu0 0.0
    %1635 = vmatprep.subr.mxu0 0.0
    %1636 = vmatpush1.msra.mxu0 0.0
    %1637 = vmatprep.subr.mxu0 0.0
    %1638 = vmatpush1.msra.mxu0 0.0
    %1639 = vmatprep.subr.mxu0 0.0
    %1640 = vmatpush1.msra.mxu0 0.0
    %1641 = vmatprep.subr.mxu0 0.0
    %1642 = vmatpush1.msra.mxu0 0.0
    %1643 = vmatprep.subr.mxu0 0.0
    %1644 = vmatpush1.msra.mxu0 0.0
    %1645 = vmatprep.subr.mxu0 0.0
    %1646 = vmatpush1.msra.mxu0 0.0
    %1647 = vmatprep.mubr.f32.mxu0 0.0
    %v1648 = vand.u32 %v1500, 4294901760
    %1649 = vmatmul.mubr.f32.gmra.mrb[0].mxu0 %v1648
    %v1650 = vpop.f32.mrb[0].mxu0
    %v1651 = vadd.f32 %v1575, %v1650
    %v1652 = vpop.f32.mrb[0].mxu0
    %1653 = vdwg.mxu0
    %1654 = vmatprep.subr.mxu0 0.0
    %v1655 = vand.u32 %v1497, 4294901760
    %v1656 = vsub.f32 %v1497, %v1655
    %1657 = vmatpush1.msra.mxu0 %v1656
    %1658 = vmatprep.subr.mxu0 0.0
    %1659 = vmatpush1.msra.mxu0 0.0
    %1660 = vmatprep.subr.mxu0 0.0
    %1661 = vmatpush1.msra.mxu0 0.0
    %1662 = vmatprep.subr.mxu0 0.0
    %1663 = vmatpush1.msra.mxu0 0.0
    %1664 = vmatprep.subr.mxu0 0.0
    %1665 = vmatpush1.msra.mxu0 0.0
    %1666 = vmatprep.subr.mxu0 0.0
    %1667 = vmatpush1.msra.mxu0 0.0
    %1668 = vmatprep.subr.mxu0 0.0
    %1669 = vmatpush1.msra.mxu0 0.0
    %1670 = vmatprep.subr.mxu0 0.0
    %1671 = vmatpush1.msra.mxu0 0.0
    %1672 = vmatprep.subr.mxu0 0.0
    %1673 = vmatpush1.msra.mxu0 0.0
    %1674 = vmatprep.subr.mxu0 0.0
    %1675 = vmatpush1.msra.mxu0 0.0
    %1676 = vmatprep.subr.mxu0 0.0
    %1677 = vmatpush1.msra.mxu0 0.0
    %1678 = vmatprep.subr.mxu0 0.0
    %1679 = vmatpush1.msra.mxu0 0.0
    %1680 = vmatprep.subr.mxu0 0.0
    %1681 = vmatpush1.msra.mxu0 0.0
    %1682 = vmatprep.subr.mxu0 0.0
    %1683 = vmatpush1.msra.mxu0 0.0
    %1684 = vmatprep.subr.mxu0 0.0
    %1685 = vmatpush1.msra.mxu0 0.0
    %1686 = vmatprep.subr.mxu0 0.0
    %1687 = vmatpush1.msra.mxu0 0.0
    %1688 = vmatprep.subr.mxu0 0.0
    %1689 = vmatpush1.msra.mxu0 0.0
    %1690 = vmatprep.subr.mxu0 0.0
    %1691 = vmatpush1.msra.mxu0 0.0
    %1692 = vmatprep.subr.mxu0 0.0
    %1693 = vmatpush1.msra.mxu0 0.0
    %1694 = vmatprep.subr.mxu0 0.0
    %1695 = vmatpush1.msra.mxu0 0.0
    %1696 = vmatprep.subr.mxu0 0.0
    %1697 = vmatpush1.msra.mxu0 0.0
    %1698 = vmatprep.subr.mxu0 0.0
    %1699 = vmatpush1.msra.mxu0 0.0
    %1700 = vmatprep.subr.mxu0 0.0
    %1701 = vmatpush1.msra.mxu0 0.0
    %1702 = vmatprep.subr.mxu0 0.0
    %1703 = vmatpush1.msra.mxu0 0.0
    %1704 = vmatprep.subr.mxu0 0.0
    %1705 = vmatpush1.msra.mxu0 0.0
    %1706 = vmatprep.subr.mxu0 0.0
    %1707 = vmatpush1.msra.mxu0 0.0
    %1708 = vmatprep.subr.mxu0 0.0
    %1709 = vmatpush1.msra.mxu0 0.0
    %1710 = vmatprep.subr.mxu0 0.0
    %1711 = vmatpush1.msra.mxu0 0.0
    %1712 = vmatprep.subr.mxu0 0.0
    %1713 = vmatpush1.msra.mxu0 0.0
    %1714 = vmatprep.subr.mxu0 0.0
    %1715 = vmatpush1.msra.mxu0 0.0
    %1716 = vmatprep.subr.mxu0 0.0
    %1717 = vmatpush1.msra.mxu0 0.0
    %1718 = vmatprep.subr.mxu0 0.0
    %1719 = vmatpush1.msra.mxu0 0.0
    %1720 = vmatprep.mubr.f32.mxu0 0.0
    %v1721 = vand.u32 %v1500, 4294901760
    %v1722 = vsub.f32 %v1500, %v1721
    %1723 = vmatmul.mubr.f32.gmra.mrb[0].mxu0 %v1722
    %v1724 = vpop.f32.mrb[0].mxu0
    %v1725 = vadd.f32 %v1651, %v1724
    %v1726 = vpop.f32.mrb[0].mxu0
    %1727 = vdwg.mxu0
    %1728 = vmatprep.subr.mxu0 0.0
    %v1729 = vand.u32 %v1497, 4294901760
    %1730 = vmatpush1.msra.mxu0 %v1729
    %1731 = vmatprep.subr.mxu0 0.0
    %1732 = vmatpush1.msra.mxu0 0.0
    %1733 = vmatprep.subr.mxu0 0.0
    %1734 = vmatpush1.msra.mxu0 0.0
    %1735 = vmatprep.subr.mxu0 0.0
    %1736 = vmatpush1.msra.mxu0 0.0
    %1737 = vmatprep.subr.mxu0 0.0
    %1738 = vmatpush1.msra.mxu0 0.0
    %1739 = vmatprep.subr.mxu0 0.0
    %1740 = vmatpush1.msra.mxu0 0.0
    %1741 = vmatprep.subr.mxu0 0.0
    %1742 = vmatpush1.msra.mxu0 0.0
    %1743 = vmatprep.subr.mxu0 0.0
    %1744 = vmatpush1.msra.mxu0 0.0
    %1745 = vmatprep.subr.mxu0 0.0
    %1746 = vmatpush1.msra.mxu0 0.0
    %1747 = vmatprep.subr.mxu0 0.0
    %1748 = vmatpush1.msra.mxu0 0.0
    %1749 = vmatprep.subr.mxu0 0.0
    %1750 = vmatpush1.msra.mxu0 0.0
    %1751 = vmatprep.subr.mxu0 0.0
    %1752 = vmatpush1.msra.mxu0 0.0
    %1753 = vmatprep.subr.mxu0 0.0
    %1754 = vmatpush1.msra.mxu0 0.0
    %1755 = vmatprep.subr.mxu0 0.0
    %1756 = vmatpush1.msra.mxu0 0.0
    %1757 = vmatprep.subr.mxu0 0.0
    %1758 = vmatpush1.msra.mxu0 0.0
    %1759 = vmatprep.subr.mxu0 0.0
    %1760 = vmatpush1.msra.mxu0 0.0
    %1761 = vmatprep.subr.mxu0 0.0
    %1762 = vmatpush1.msra.mxu0 0.0
    %1763 = vmatprep.subr.mxu0 0.0
    %1764 = vmatpush1.msra.mxu0 0.0
    %1765 = vmatprep.subr.mxu0 0.0
    %1766 = vmatpush1.msra.mxu0 0.0
    %1767 = vmatprep.subr.mxu0 0.0
    %1768 = vmatpush1.msra.mxu0 0.0
    %1769 = vmatprep.subr.mxu0 0.0
    %1770 = vmatpush1.msra.mxu0 0.0
    %1771 = vmatprep.subr.mxu0 0.0
    %1772 = vmatpush1.msra.mxu0 0.0
    %1773 = vmatprep.subr.mxu0 0.0
    %1774 = vmatpush1.msra.mxu0 0.0
    %1775 = vmatprep.subr.mxu0 0.0
    %1776 = vmatpush1.msra.mxu0 0.0
    %1777 = vmatprep.subr.mxu0 0.0
    %1778 = vmatpush1.msra.mxu0 0.0
    %1779 = vmatprep.subr.mxu0 0.0
    %1780 = vmatpush1.msra.mxu0 0.0
    %1781 = vmatprep.subr.mxu0 0.0
    %1782 = vmatpush1.msra.mxu0 0.0
    %1783 = vmatprep.subr.mxu0 0.0
    %1784 = vmatpush1.msra.mxu0 0.0
    %1785 = vmatprep.subr.mxu0 0.0
    %1786 = vmatpush1.msra.mxu0 0.0
    %1787 = vmatprep.subr.mxu0 0.0
    %1788 = vmatpush1.msra.mxu0 0.0
    %1789 = vmatprep.subr.mxu0 0.0
    %1790 = vmatpush1.msra.mxu0 0.0
    %1791 = vmatprep.subr.mxu0 0.0
    %1792 = vmatpush1.msra.mxu0 0.0
    %1793 = vmatprep.mubr.f32.mxu0 0.0
    %v1794 = vand.u32 %v1500, 4294901760
    %v1795 = vsub.f32 %v1500, %v1794
    %v1796 = vand.u32 %v1795, 4294901760
    %1797 = vmatmul.mubr.f32.gmra.mrb[0].mxu0 %v1796
    %v1798 = vpop.f32.mrb[0].mxu0
    %v1799 = vadd.f32 %v1725, %v1798
    %v1800 = vpop.f32.mrb[0].mxu0
    %1801 = vdwg.mxu0
    %1802 = vmatprep.subr.mxu0 0.0
    %v1803 = vand.u32 %v1497, 4294901760
    %v1804 = vsub.f32 %v1497, %v1803
    %v1805 = vand.u32 %v1804, 4294901760
    %1806 = vmatpush1.msra.mxu0 %v1805
    %1807 = vmatprep.subr.mxu0 0.0
    %1808 = vmatpush1.msra.mxu0 0.0
    %1809 = vmatprep.subr.mxu0 0.0
    %1810 = vmatpush1.msra.mxu0 0.0
    %1811 = vmatprep.subr.mxu0 0.0
    %1812 = vmatpush1.msra.mxu0 0.0
    %1813 = vmatprep.subr.mxu0 0.0
    %1814 = vmatpush1.msra.mxu0 0.0
    %1815 = vmatprep.subr.mxu0 0.0
    %1816 = vmatpush1.msra.mxu0 0.0
    %1817 = vmatprep.subr.mxu0 0.0
    %1818 = vmatpush1.msra.mxu0 0.0
    %1819 = vmatprep.subr.mxu0 0.0
    %1820 = vmatpush1.msra.mxu0 0.0
    %1821 = vmatprep.subr.mxu0 0.0
    %1822 = vmatpush1.msra.mxu0 0.0
    %1823 = vmatprep.subr.mxu0 0.0
    %1824 = vmatpush1.msra.mxu0 0.0
    %1825 = vmatprep.subr.mxu0 0.0
    %1826 = vmatpush1.msra.mxu0 0.0
    %1827 = vmatprep.subr.mxu0 0.0
    %1828 = vmatpush1.msra.mxu0 0.0
    %1829 = vmatprep.subr.mxu0 0.0
    %1830 = vmatpush1.msra.mxu0 0.0
    %1831 = vmatprep.subr.mxu0 0.0
    %1832 = vmatpush1.msra.mxu0 0.0
    %1833 = vmatprep.subr.mxu0 0.0
    %1834 = vmatpush1.msra.mxu0 0.0
    %1835 = vmatprep.subr.mxu0 0.0
    %1836 = vmatpush1.msra.mxu0 0.0
    %1837 = vmatprep.subr.mxu0 0.0
    %1838 = vmatpush1.msra.mxu0 0.0
    %1839 = vmatprep.subr.mxu0 0.0
    %1840 = vmatpush1.msra.mxu0 0.0
    %1841 = vmatprep.subr.mxu0 0.0
    %1842 = vmatpush1.msra.mxu0 0.0
    %1843 = vmatprep.subr.mxu0 0.0
    %1844 = vmatpush1.msra.mxu0 0.0
    %1845 = vmatprep.subr.mxu0 0.0
    %1846 = vmatpush1.msra.mxu0 0.0
    %1847 = vmatprep.subr.mxu0 0.0
    %1848 = vmatpush1.msra.mxu0 0.0
    %1849 = vmatprep.subr.mxu0 0.0
    %1850 = vmatpush1.msra.mxu0 0.0
    %1851 = vmatprep.subr.mxu0 0.0
    %1852 = vmatpush1.msra.mxu0 0.0
    %1853 = vmatprep.subr.mxu0 0.0
    %1854 = vmatpush1.msra.mxu0 0.0
    %1855 = vmatprep.subr.mxu0 0.0
    %1856 = vmatpush1.msra.mxu0 0.0
    %1857 = vmatprep.subr.mxu0 0.0
    %1858 = vmatpush1.msra.mxu0 0.0
    %1859 = vmatprep.subr.mxu0 0.0
    %1860 = vmatpush1.msra.mxu0 0.0
    %1861 = vmatprep.subr.mxu0 0.0
    %1862 = vmatpush1.msra.mxu0 0.0
    %1863 = vmatprep.subr.mxu0 0.0
    %1864 = vmatpush1.msra.mxu0 0.0
    %1865 = vmatprep.subr.mxu0 0.0
    %1866 = vmatpush1.msra.mxu0 0.0
    %1867 = vmatprep.subr.mxu0 0.0
    %1868 = vmatpush1.msra.mxu0 0.0
    %1869 = vmatprep.mubr.f32.mxu0 0.0
    %v1870 = vand.u32 %v1500, 4294901760
    %1871 = vmatmul.mubr.f32.gmra.mrb[0].mxu0 %v1870
    %v1872 = vpop.f32.mrb[0].mxu0
    %v1873 = vadd.f32 %v1799, %v1872
    %v1874 = vpop.f32.mrb[0].mxu0
    %1875 = vdwg.mxu0
    %1876 = vmatprep.subr.mxu0 0.0
    %v1877 = vand.u32 %v1497, 4294901760
    %1878 = vmatpush1.msra.mxu0 %v1877
    %1879 = vmatprep.subr.mxu0 0.0
    %1880 = vmatpush1.msra.mxu0 0.0
    %1881 = vmatprep.subr.mxu0 0.0
    %1882 = vmatpush1.msra.mxu0 0.0
    %1883 = vmatprep.subr.mxu0 0.0
    %1884 = vmatpush1.msra.mxu0 0.0
    %1885 = vmatprep.subr.mxu0 0.0
    %1886 = vmatpush1.msra.mxu0 0.0
    %1887 = vmatprep.subr.mxu0 0.0
    %1888 = vmatpush1.msra.mxu0 0.0
    %1889 = vmatprep.subr.mxu0 0.0
    %1890 = vmatpush1.msra.mxu0 0.0
    %1891 = vmatprep.subr.mxu0 0.0
    %1892 = vmatpush1.msra.mxu0 0.0
    %1893 = vmatprep.subr.mxu0 0.0
    %1894 = vmatpush1.msra.mxu0 0.0
    %1895 = vmatprep.subr.mxu0 0.0
    %1896 = vmatpush1.msra.mxu0 0.0
    %1897 = vmatprep.subr.mxu0 0.0
    %1898 = vmatpush1.msra.mxu0 0.0
    %1899 = vmatprep.subr.mxu0 0.0
    %1900 = vmatpush1.msra.mxu0 0.0
    %1901 = vmatprep.subr.mxu0 0.0
    %1902 = vmatpush1.msra.mxu0 0.0
    %1903 = vmatprep.subr.mxu0 0.0
    %1904 = vmatpush1.msra.mxu0 0.0
    %1905 = vmatprep.subr.mxu0 0.0
    %1906 = vmatpush1.msra.mxu0 0.0
    %1907 = vmatprep.subr.mxu0 0.0
    %1908 = vmatpush1.msra.mxu0 0.0
    %1909 = vmatprep.subr.mxu0 0.0
    %1910 = vmatpush1.msra.mxu0 0.0
    %1911 = vmatprep.subr.mxu0 0.0
    %1912 = vmatpush1.msra.mxu0 0.0
    %1913 = vmatprep.subr.mxu0 0.0
    %1914 = vmatpush1.msra.mxu0 0.0
    %1915 = vmatprep.subr.mxu0 0.0
    %1916 = vmatpush1.msra.mxu0 0.0
    %1917 = vmatprep.subr.mxu0 0.0
    %1918 = vmatpush1.msra.mxu0 0.0
    %1919 = vmatprep.subr.mxu0 0.0
    %1920 = vmatpush1.msra.mxu0 0.0
    %1921 = vmatprep.subr.mxu0 0.0
    %1922 = vmatpush1.msra.mxu0 0.0
    %1923 = vmatprep.subr.mxu0 0.0
    %1924 = vmatpush1.msra.mxu0 0.0
    %1925 = vmatprep.subr.mxu0 0.0
    %1926 = vmatpush1.msra.mxu0 0.0
    %1927 = vmatprep.subr.mxu0 0.0
    %1928 = vmatpush1.msra.mxu0 0.0
    %1929 = vmatprep.subr.mxu0 0.0
    %1930 = vmatpush1.msra.mxu0 0.0
    %1931 = vmatprep.subr.mxu0 0.0
    %1932 = vmatpush1.msra.mxu0 0.0
    %1933 = vmatprep.subr.mxu0 0.0
    %1934 = vmatpush1.msra.mxu0 0.0
    %1935 = vmatprep.subr.mxu0 0.0
    %1936 = vmatpush1.msra.mxu0 0.0
    %1937 = vmatprep.subr.mxu0 0.0
    %1938 = vmatpush1.msra.mxu0 0.0
    %1939 = vmatprep.subr.mxu0 0.0
    %1940 = vmatpush1.msra.mxu0 0.0
    %1941 = vmatprep.mubr.f32.mxu0 0.0
    %v1942 = vand.u32 %v1500, 4294901760
    %1943 = vmatmul.mubr.f32.gmra.mrb[0].mxu0 %v1942
    %v1944 = vpop.f32.mrb[0].mxu0
    %v1945 = vadd.f32 %v1873, %v1944
    %v1946 = vpop.f32.mrb[0].mxu0
    %1947 = vdwg.mxu0
    %v1948 = vld [vmem:[#allocation2] sm:$0xff]
    %v1950 = vsel %vm80, %v1948, 0
    %1952 = vmatprep.subr.mxu0 0.0
    %v1953 = vand.u32 %v1945, 4294901760
    %1954 = vmatpush1.msra.mxu0 %v1953
    %1955 = vmatprep.subr.mxu0 0.0
    %1956 = vmatpush1.msra.mxu0 0.0
    %1957 = vmatprep.subr.mxu0 0.0
    %1958 = vmatpush1.msra.mxu0 0.0
    %1959 = vmatprep.subr.mxu0 0.0
    %1960 = vmatpush1.msra.mxu0 0.0
    %1961 = vmatprep.subr.mxu0 0.0
    %1962 = vmatpush1.msra.mxu0 0.0
    %1963 = vmatprep.subr.mxu0 0.0
    %1964 = vmatpush1.msra.mxu0 0.0
    %1965 = vmatprep.subr.mxu0 0.0
    %1966 = vmatpush1.msra.mxu0 0.0
    %1967 = vmatprep.subr.mxu0 0.0
    %1968 = vmatpush1.msra.mxu0 0.0
    %1969 = vmatprep.subr.mxu0 0.0
    %1970 = vmatpush1.msra.mxu0 0.0
    %1971 = vmatprep.subr.mxu0 0.0
    %1972 = vmatpush1.msra.mxu0 0.0
    %1973 = vmatprep.subr.mxu0 0.0
    %1974 = vmatpush1.msra.mxu0 0.0
    %1975 = vmatprep.subr.mxu0 0.0
    %1976 = vmatpush1.msra.mxu0 0.0
    %1977 = vmatprep.subr.mxu0 0.0
    %1978 = vmatpush1.msra.mxu0 0.0
    %1979 = vmatprep.subr.mxu0 0.0
    %1980 = vmatpush1.msra.mxu0 0.0
    %1981 = vmatprep.subr.mxu0 0.0
    %1982 = vmatpush1.msra.mxu0 0.0
    %1983 = vmatprep.subr.mxu0 0.0
    %1984 = vmatpush1.msra.mxu0 0.0
    %1985 = vmatprep.subr.mxu0 0.0
    %1986 = vmatpush1.msra.mxu0 0.0
    %1987 = vmatprep.subr.mxu0 0.0
    %1988 = vmatpush1.msra.mxu0 0.0
    %1989 = vmatprep.subr.mxu0 0.0
    %1990 = vmatpush1.msra.mxu0 0.0
    %1991 = vmatprep.subr.mxu0 0.0
    %1992 = vmatpush1.msra.mxu0 0.0
    %1993 = vmatprep.subr.mxu0 0.0
    %1994 = vmatpush1.msra.mxu0 0.0
    %1995 = vmatprep.subr.mxu0 0.0
    %1996 = vmatpush1.msra.mxu0 0.0
    %1997 = vmatprep.subr.mxu0 0.0
    %1998 = vmatpush1.msra.mxu0 0.0
    %1999 = vmatprep.subr.mxu0 0.0
    %2000 = vmatpush1.msra.mxu0 0.0
    %2001 = vmatprep.subr.mxu0 0.0
    %2002 = vmatpush1.msra.mxu0 0.0
    %2003 = vmatprep.subr.mxu0 0.0
    %2004 = vmatpush1.msra.mxu0 0.0
    %2005 = vmatprep.subr.mxu0 0.0
    %2006 = vmatpush1.msra.mxu0 0.0
    %2007 = vmatprep.subr.mxu0 0.0
    %2008 = vmatpush1.msra.mxu0 0.0
    %2009 = vmatprep.subr.mxu0 0.0
    %2010 = vmatpush1.msra.mxu0 0.0
    %2011 = vmatprep.subr.mxu0 0.0
    %2012 = vmatpush1.msra.mxu0 0.0
    %2013 = vmatprep.subr.mxu0 0.0
    %2014 = vmatpush1.msra.mxu0 0.0
    %2015 = vmatprep.subr.mxu0 0.0
    %2016 = vmatpush1.msra.mxu0 0.0
    %2017 = vmatprep.mubr.f32.mxu0 0.0
    %v2018 = vand.u32 %v1950, 4294901760
    %v2019 = vsub.f32 %v1950, %v2018
    %v2020 = vand.u32 %v2019, 4294901760
    %v2021 = vsub.f32 %v2019, %v2020
    %v2022 = vand.u32 %v2021, 4294901760
    %2023 = vmatmul.mubr.f32.gmra.mrb[0].mxu0 %v2022
    %v2024 = vpop.f32.mrb[0].mxu0
    %v2025 = vadd.f32 0.0, %v2024
    %v2026 = vpop.f32.mrb[0].mxu0
    %2027 = vdwg.mxu0
    %2028 = vmatprep.subr.mxu0 0.0
    %v2029 = vand.u32 %v1945, 4294901760
    %v2030 = vsub.f32 %v1945, %v2029
    %v2031 = vand.u32 %v2030, 4294901760
    %v2032 = vsub.f32 %v2030, %v2031
    %v2033 = vand.u32 %v2032, 4294901760
    %2034 = vmatpush1.msra.mxu0 %v2033
    %2035 = vmatprep.subr.mxu0 0.0
    %2036 = vmatpush1.msra.mxu0 0.0
    %2037 = vmatprep.subr.mxu0 0.0
    %2038 = vmatpush1.msra.mxu0 0.0
    %2039 = vmatprep.subr.mxu0 0.0
    %2040 = vmatpush1.msra.mxu0 0.0
    %2041 = vmatprep.subr.mxu0 0.0
    %2042 = vmatpush1.msra.mxu0 0.0
    %2043 = vmatprep.subr.mxu0 0.0
    %2044 = vmatpush1.msra.mxu0 0.0
    %2045 = vmatprep.subr.mxu0 0.0
    %2046 = vmatpush1.msra.mxu0 0.0
    %2047 = vmatprep.subr.mxu0 0.0
    %2048 = vmatpush1.msra.mxu0 0.0
    %2049 = vmatprep.subr.mxu0 0.0
    %2050 = vmatpush1.msra.mxu0 0.0
    %2051 = vmatprep.subr.mxu0 0.0
    %2052 = vmatpush1.msra.mxu0 0.0
    %2053 = vmatprep.subr.mxu0 0.0
    %2054 = vmatpush1.msra.mxu0 0.0
    %2055 = vmatprep.subr.mxu0 0.0
    %2056 = vmatpush1.msra.mxu0 0.0
    %2057 = vmatprep.subr.mxu0 0.0
    %2058 = vmatpush1.msra.mxu0 0.0
    %2059 = vmatprep.subr.mxu0 0.0
    %2060 = vmatpush1.msra.mxu0 0.0
    %2061 = vmatprep.subr.mxu0 0.0
    %2062 = vmatpush1.msra.mxu0 0.0
    %2063 = vmatprep.subr.mxu0 0.0
    %2064 = vmatpush1.msra.mxu0 0.0
    %2065 = vmatprep.subr.mxu0 0.0
    %2066 = vmatpush1.msra.mxu0 0.0
    %2067 = vmatprep.subr.mxu0 0.0
    %2068 = vmatpush1.msra.mxu0 0.0
    %2069 = vmatprep.subr.mxu0 0.0
    %2070 = vmatpush1.msra.mxu0 0.0
    %2071 = vmatprep.subr.mxu0 0.0
    %2072 = vmatpush1.msra.mxu0 0.0
    %2073 = vmatprep.subr.mxu0 0.0
    %2074 = vmatpush1.msra.mxu0 0.0
    %2075 = vmatprep.subr.mxu0 0.0
    %2076 = vmatpush1.msra.mxu0 0.0
    %2077 = vmatprep.subr.mxu0 0.0
    %2078 = vmatpush1.msra.mxu0 0.0
    %2079 = vmatprep.subr.mxu0 0.0
    %2080 = vmatpush1.msra.mxu0 0.0
    %2081 = vmatprep.subr.mxu0 0.0
    %2082 = vmatpush1.msra.mxu0 0.0
    %2083 = vmatprep.subr.mxu0 0.0
    %2084 = vmatpush1.msra.mxu0 0.0
    %2085 = vmatprep.subr.mxu0 0.0
    %2086 = vmatpush1.msra.mxu0 0.0
    %2087 = vmatprep.subr.mxu0 0.0
    %2088 = vmatpush1.msra.mxu0 0.0
    %2089 = vmatprep.subr.mxu0 0.0
    %2090 = vmatpush1.msra.mxu0 0.0
    %2091 = vmatprep.subr.mxu0 0.0
    %2092 = vmatpush1.msra.mxu0 0.0
    %2093 = vmatprep.subr.mxu0 0.0
    %2094 = vmatpush1.msra.mxu0 0.0
    %2095 = vmatprep.subr.mxu0 0.0
    %2096 = vmatpush1.msra.mxu0 0.0
    %2097 = vmatprep.mubr.f32.mxu0 0.0
    %v2098 = vand.u32 %v1950, 4294901760
    %2099 = vmatmul.mubr.f32.gmra.mrb[0].mxu0 %v2098
    %v2100 = vpop.f32.mrb[0].mxu0
    %v2101 = vadd.f32 %v2025, %v2100
    %v2102 = vpop.f32.mrb[0].mxu0
    %2103 = vdwg.mxu0
    %2104 = vmatprep.subr.mxu0 0.0
    %v2105 = vand.u32 %v1945, 4294901760
    %v2106 = vsub.f32 %v1945, %v2105
    %2107 = vmatpush1.msra.mxu0 %v2106
    %2108 = vmatprep.subr.mxu0 0.0
    %2109 = vmatpush1.msra.mxu0 0.0
    %2110 = vmatprep.subr.mxu0 0.0
    %2111 = vmatpush1.msra.mxu0 0.0
    %2112 = vmatprep.subr.mxu0 0.0
    %2113 = vmatpush1.msra.mxu0 0.0
    %2114 = vmatprep.subr.mxu0 0.0
    %2115 = vmatpush1.msra.mxu0 0.0
    %2116 = vmatprep.subr.mxu0 0.0
    %2117 = vmatpush1.msra.mxu0 0.0
    %2118 = vmatprep.subr.mxu0 0.0
    %2119 = vmatpush1.msra.mxu0 0.0
    %2120 = vmatprep.subr.mxu0 0.0
    %2121 = vmatpush1.msra.mxu0 0.0
    %2122 = vmatprep.subr.mxu0 0.0
    %2123 = vmatpush1.msra.mxu0 0.0
    %2124 = vmatprep.subr.mxu0 0.0
    %2125 = vmatpush1.msra.mxu0 0.0
    %2126 = vmatprep.subr.mxu0 0.0
    %2127 = vmatpush1.msra.mxu0 0.0
    %2128 = vmatprep.subr.mxu0 0.0
    %2129 = vmatpush1.msra.mxu0 0.0
    %2130 = vmatprep.subr.mxu0 0.0
    %2131 = vmatpush1.msra.mxu0 0.0
    %2132 = vmatprep.subr.mxu0 0.0
    %2133 = vmatpush1.msra.mxu0 0.0
    %2134 = vmatprep.subr.mxu0 0.0
    %2135 = vmatpush1.msra.mxu0 0.0
    %2136 = vmatprep.subr.mxu0 0.0
    %2137 = vmatpush1.msra.mxu0 0.0
    %2138 = vmatprep.subr.mxu0 0.0
    %2139 = vmatpush1.msra.mxu0 0.0
    %2140 = vmatprep.subr.mxu0 0.0
    %2141 = vmatpush1.msra.mxu0 0.0
    %2142 = vmatprep.subr.mxu0 0.0
    %2143 = vmatpush1.msra.mxu0 0.0
    %2144 = vmatprep.subr.mxu0 0.0
    %2145 = vmatpush1.msra.mxu0 0.0
    %2146 = vmatprep.subr.mxu0 0.0
    %2147 = vmatpush1.msra.mxu0 0.0
    %2148 = vmatprep.subr.mxu0 0.0
    %2149 = vmatpush1.msra.mxu0 0.0
    %2150 = vmatprep.subr.mxu0 0.0
    %2151 = vmatpush1.msra.mxu0 0.0
    %2152 = vmatprep.subr.mxu0 0.0
    %2153 = vmatpush1.msra.mxu0 0.0
    %2154 = vmatprep.subr.mxu0 0.0
    %2155 = vmatpush1.msra.mxu0 0.0
    %2156 = vmatprep.subr.mxu0 0.0
    %2157 = vmatpush1.msra.mxu0 0.0
    %2158 = vmatprep.subr.mxu0 0.0
    %2159 = vmatpush1.msra.mxu0 0.0
    %2160 = vmatprep.subr.mxu0 0.0
    %2161 = vmatpush1.msra.mxu0 0.0
    %2162 = vmatprep.subr.mxu0 0.0
    %2163 = vmatpush1.msra.mxu0 0.0
    %2164 = vmatprep.subr.mxu0 0.0
    %2165 = vmatpush1.msra.mxu0 0.0
    %2166 = vmatprep.subr.mxu0 0.0
    %2167 = vmatpush1.msra.mxu0 0.0
    %2168 = vmatprep.subr.mxu0 0.0
    %2169 = vmatpush1.msra.mxu0 0.0
    %2170 = vmatprep.mubr.f32.mxu0 0.0
    %v2171 = vand.u32 %v1950, 4294901760
    %v2172 = vsub.f32 %v1950, %v2171
    %2173 = vmatmul.mubr.f32.gmra.mrb[0].mxu0 %v2172
    %v2174 = vpop.f32.mrb[0].mxu0
    %v2175 = vadd.f32 %v2101, %v2174
    %v2176 = vpop.f32.mrb[0].mxu0
    %2177 = vdwg.mxu0
    %2178 = vmatprep.subr.mxu0 0.0
    %v2179 = vand.u32 %v1945, 4294901760
    %2180 = vmatpush1.msra.mxu0 %v2179
    %2181 = vmatprep.subr.mxu0 0.0
    %2182 = vmatpush1.msra.mxu0 0.0
    %2183 = vmatprep.subr.mxu0 0.0
    %2184 = vmatpush1.msra.mxu0 0.0
    %2185 = vmatprep.subr.mxu0 0.0
    %2186 = vmatpush1.msra.mxu0 0.0
    %2187 = vmatprep.subr.mxu0 0.0
    %2188 = vmatpush1.msra.mxu0 0.0
    %2189 = vmatprep.subr.mxu0 0.0
    %2190 = vmatpush1.msra.mxu0 0.0
    %2191 = vmatprep.subr.mxu0 0.0
    %2192 = vmatpush1.msra.mxu0 0.0
    %2193 = vmatprep.subr.mxu0 0.0
    %2194 = vmatpush1.msra.mxu0 0.0
    %2195 = vmatprep.subr.mxu0 0.0
    %2196 = vmatpush1.msra.mxu0 0.0
    %2197 = vmatprep.subr.mxu0 0.0
    %2198 = vmatpush1.msra.mxu0 0.0
    %2199 = vmatprep.subr.mxu0 0.0
    %2200 = vmatpush1.msra.mxu0 0.0
    %2201 = vmatprep.subr.mxu0 0.0
    %2202 = vmatpush1.msra.mxu0 0.0
    %2203 = vmatprep.subr.mxu0 0.0
    %2204 = vmatpush1.msra.mxu0 0.0
    %2205 = vmatprep.subr.mxu0 0.0
    %2206 = vmatpush1.msra.mxu0 0.0
    %2207 = vmatprep.subr.mxu0 0.0
    %2208 = vmatpush1.msra.mxu0 0.0
    %2209 = vmatprep.subr.mxu0 0.0
    %2210 = vmatpush1.msra.mxu0 0.0
    %2211 = vmatprep.subr.mxu0 0.0
    %2212 = vmatpush1.msra.mxu0 0.0
    %2213 = vmatprep.subr.mxu0 0.0
    %2214 = vmatpush1.msra.mxu0 0.0
    %2215 = vmatprep.subr.mxu0 0.0
    %2216 = vmatpush1.msra.mxu0 0.0
    %2217 = vmatprep.subr.mxu0 0.0
    %2218 = vmatpush1.msra.mxu0 0.0
    %2219 = vmatprep.subr.mxu0 0.0
    %2220 = vmatpush1.msra.mxu0 0.0
    %2221 = vmatprep.subr.mxu0 0.0
    %2222 = vmatpush1.msra.mxu0 0.0
    %2223 = vmatprep.subr.mxu0 0.0
    %2224 = vmatpush1.msra.mxu0 0.0
    %2225 = vmatprep.subr.mxu0 0.0
    %2226 = vmatpush1.msra.mxu0 0.0
    %2227 = vmatprep.subr.mxu0 0.0
    %2228 = vmatpush1.msra.mxu0 0.0
    %2229 = vmatprep.subr.mxu0 0.0
    %2230 = vmatpush1.msra.mxu0 0.0
    %2231 = vmatprep.subr.mxu0 0.0
    %2232 = vmatpush1.msra.mxu0 0.0
    %2233 = vmatprep.subr.mxu0 0.0
    %2234 = vmatpush1.msra.mxu0 0.0
    %2235 = vmatprep.subr.mxu0 0.0
    %2236 = vmatpush1.msra.mxu0 0.0
    %2237 = vmatprep.subr.mxu0 0.0
    %2238 = vmatpush1.msra.mxu0 0.0
    %2239 = vmatprep.subr.mxu0 0.0
    %2240 = vmatpush1.msra.mxu0 0.0
    %2241 = vmatprep.subr.mxu0 0.0
    %2242 = vmatpush1.msra.mxu0 0.0
    %2243 = vmatprep.mubr.f32.mxu0 0.0
    %v2244 = vand.u32 %v1950, 4294901760
    %v2245 = vsub.f32 %v1950, %v2244
    %v2246 = vand.u32 %v2245, 4294901760
    %2247 = vmatmul.mubr.f32.gmra.mrb[0].mxu0 %v2246
    %v2248 = vpop.f32.mrb[0].mxu0
    %v2249 = vadd.f32 %v2175, %v2248
    %v2250 = vpop.f32.mrb[0].mxu0
    %2251 = vdwg.mxu0
    %2252 = vmatprep.subr.mxu0 0.0
    %v2253 = vand.u32 %v1945, 4294901760
    %v2254 = vsub.f32 %v1945, %v2253
    %v2255 = vand.u32 %v2254, 4294901760
    %2256 = vmatpush1.msra.mxu0 %v2255
    %2257 = vmatprep.subr.mxu0 0.0
    %2258 = vmatpush1.msra.mxu0 0.0
    %2259 = vmatprep.subr.mxu0 0.0
    %2260 = vmatpush1.msra.mxu0 0.0
    %2261 = vmatprep.subr.mxu0 0.0
    %2262 = vmatpush1.msra.mxu0 0.0
    %2263 = vmatprep.subr.mxu0 0.0
    %2264 = vmatpush1.msra.mxu0 0.0
    %2265 = vmatprep.subr.mxu0 0.0
    %2266 = vmatpush1.msra.mxu0 0.0
    %2267 = vmatprep.subr.mxu0 0.0
    %2268 = vmatpush1.msra.mxu0 0.0
    %2269 = vmatprep.subr.mxu0 0.0
    %2270 = vmatpush1.msra.mxu0 0.0
    %2271 = vmatprep.subr.mxu0 0.0
    %2272 = vmatpush1.msra.mxu0 0.0
    %2273 = vmatprep.subr.mxu0 0.0
    %2274 = vmatpush1.msra.mxu0 0.0
    %2275 = vmatprep.subr.mxu0 0.0
    %2276 = vmatpush1.msra.mxu0 0.0
    %2277 = vmatprep.subr.mxu0 0.0
    %2278 = vmatpush1.msra.mxu0 0.0
    %2279 = vmatprep.subr.mxu0 0.0
    %2280 = vmatpush1.msra.mxu0 0.0
    %2281 = vmatprep.subr.mxu0 0.0
    %2282 = vmatpush1.msra.mxu0 0.0
    %2283 = vmatprep.subr.mxu0 0.0
    %2284 = vmatpush1.msra.mxu0 0.0
    %2285 = vmatprep.subr.mxu0 0.0
    %2286 = vmatpush1.msra.mxu0 0.0
    %2287 = vmatprep.subr.mxu0 0.0
    %2288 = vmatpush1.msra.mxu0 0.0
    %2289 = vmatprep.subr.mxu0 0.0
    %2290 = vmatpush1.msra.mxu0 0.0
    %2291 = vmatprep.subr.mxu0 0.0
    %2292 = vmatpush1.msra.mxu0 0.0
    %2293 = vmatprep.subr.mxu0 0.0
    %2294 = vmatpush1.msra.mxu0 0.0
    %2295 = vmatprep.subr.mxu0 0.0
    %2296 = vmatpush1.msra.mxu0 0.0
    %2297 = vmatprep.subr.mxu0 0.0
    %2298 = vmatpush1.msra.mxu0 0.0
    %2299 = vmatprep.subr.mxu0 0.0
    %2300 = vmatpush1.msra.mxu0 0.0
    %2301 = vmatprep.subr.mxu0 0.0
    %2302 = vmatpush1.msra.mxu0 0.0
    %2303 = vmatprep.subr.mxu0 0.0
    %2304 = vmatpush1.msra.mxu0 0.0
    %2305 = vmatprep.subr.mxu0 0.0
    %2306 = vmatpush1.msra.mxu0 0.0
    %2307 = vmatprep.subr.mxu0 0.0
    %2308 = vmatpush1.msra.mxu0 0.0
    %2309 = vmatprep.subr.mxu0 0.0
    %2310 = vmatpush1.msra.mxu0 0.0
    %2311 = vmatprep.subr.mxu0 0.0
    %2312 = vmatpush1.msra.mxu0 0.0
    %2313 = vmatprep.subr.mxu0 0.0
    %2314 = vmatpush1.msra.mxu0 0.0
    %2315 = vmatprep.subr.mxu0 0.0
    %2316 = vmatpush1.msra.mxu0 0.0
    %2317 = vmatprep.subr.mxu0 0.0
    %2318 = vmatpush1.msra.mxu0 0.0
    %2319 = vmatprep.mubr.f32.mxu0 0.0
    %v2320 = vand.u32 %v1950, 4294901760
    %2321 = vmatmul.mubr.f32.gmra.mrb[0].mxu0 %v2320
    %v2322 = vpop.f32.mrb[0].mxu0
    %v2323 = vadd.f32 %v2249, %v2322
    %v2324 = vpop.f32.mrb[0].mxu0
    %2325 = vdwg.mxu0
    %2326 = vmatprep.subr.mxu0 0.0
    %v2327 = vand.u32 %v1945, 4294901760
    %2328 = vmatpush1.msra.mxu0 %v2327
    %2329 = vmatprep.subr.mxu0 0.0
    %2330 = vmatpush1.msra.mxu0 0.0
    %2331 = vmatprep.subr.mxu0 0.0
    %2332 = vmatpush1.msra.mxu0 0.0
    %2333 = vmatprep.subr.mxu0 0.0
    %2334 = vmatpush1.msra.mxu0 0.0
    %2335 = vmatprep.subr.mxu0 0.0
    %2336 = vmatpush1.msra.mxu0 0.0
    %2337 = vmatprep.subr.mxu0 0.0
    %2338 = vmatpush1.msra.mxu0 0.0
    %2339 = vmatprep.subr.mxu0 0.0
    %2340 = vmatpush1.msra.mxu0 0.0
    %2341 = vmatprep.subr.mxu0 0.0
    %2342 = vmatpush1.msra.mxu0 0.0
    %2343 = vmatprep.subr.mxu0 0.0
    %2344 = vmatpush1.msra.mxu0 0.0
    %2345 = vmatprep.subr.mxu0 0.0
    %2346 = vmatpush1.msra.mxu0 0.0
    %2347 = vmatprep.subr.mxu0 0.0
    %2348 = vmatpush1.msra.mxu0 0.0
    %2349 = vmatprep.subr.mxu0 0.0
    %2350 = vmatpush1.msra.mxu0 0.0
    %2351 = vmatprep.subr.mxu0 0.0
    %2352 = vmatpush1.msra.mxu0 0.0
    %2353 = vmatprep.subr.mxu0 0.0
    %2354 = vmatpush1.msra.mxu0 0.0
    %2355 = vmatprep.subr.mxu0 0.0
    %2356 = vmatpush1.msra.mxu0 0.0
    %2357 = vmatprep.subr.mxu0 0.0
    %2358 = vmatpush1.msra.mxu0 0.0
    %2359 = vmatprep.subr.mxu0 0.0
    %2360 = vmatpush1.msra.mxu0 0.0
    %2361 = vmatprep.subr.mxu0 0.0
    %2362 = vmatpush1.msra.mxu0 0.0
    %2363 = vmatprep.subr.mxu0 0.0
    %2364 = vmatpush1.msra.mxu0 0.0
    %2365 = vmatprep.subr.mxu0 0.0
    %2366 = vmatpush1.msra.mxu0 0.0
    %2367 = vmatprep.subr.mxu0 0.0
    %2368 = vmatpush1.msra.mxu0 0.0
    %2369 = vmatprep.subr.mxu0 0.0
    %2370 = vmatpush1.msra.mxu0 0.0
    %2371 = vmatprep.subr.mxu0 0.0
    %2372 = vmatpush1.msra.mxu0 0.0
    %2373 = vmatprep.subr.mxu0 0.0
    %2374 = vmatpush1.msra.mxu0 0.0
    %2375 = vmatprep.subr.mxu0 0.0
    %2376 = vmatpush1.msra.mxu0 0.0
    %2377 = vmatprep.subr.mxu0 0.0
    %2378 = vmatpush1.msra.mxu0 0.0
    %2379 = vmatprep.subr.mxu0 0.0
    %2380 = vmatpush1.msra.mxu0 0.0
    %2381 = vmatprep.subr.mxu0 0.0
    %2382 = vmatpush1.msra.mxu0 0.0
    %2383 = vmatprep.subr.mxu0 0.0
    %2384 = vmatpush1.msra.mxu0 0.0
    %2385 = vmatprep.subr.mxu0 0.0
    %2386 = vmatpush1.msra.mxu0 0.0
    %2387 = vmatprep.subr.mxu0 0.0
    %2388 = vmatpush1.msra.mxu0 0.0
    %2389 = vmatprep.subr.mxu0 0.0
    %2390 = vmatpush1.msra.mxu0 0.0
    %2391 = vmatprep.mubr.f32.mxu0 0.0
    %v2392 = vand.u32 %v1950, 4294901760
    %2393 = vmatmul.mubr.f32.gmra.mrb[0].mxu0 %v2392
    %v2394 = vpop.f32.mrb[0].mxu0
    %v2395 = vadd.f32 %v2323, %v2394
    %v2396 = vpop.f32.mrb[0].mxu0
    %2397 = vdwg.mxu0
    %v2398 = vld [vmem:[#allocation8] sm:$0xff]
    %v2399 = vld [vmem:[#allocation8 + $0x8] sm:$0xff]
    %v2400 = vld [vmem:[%s5] sm:$0x1]
    %v2402 = vlaneseq
    %v2403 = vshrl.u32 %v2402, 7
    %v2404 = vsub.s32 0, %v2403
    %v2405 = vrot.slane %v2400, %v2404
    %v2408 = vsel %vm1033, %v2395, 0
    %2410 = vmatprep.subr.mxu0 0.0
    %v2411 = vand.u32 %v2398, 4294901760
    %2412 = vmatpush1.msra.mxu0 %v2411
    %2413 = vmatprep.subr.mxu0 0.0
    %v2414 = vand.u32 %v2399, 4294901760
    %2415 = vmatpush1.msra.mxu0 %v2414
    %2416 = vmatprep.subr.mxu0 0.0
    %2417 = vmatpush1.msra.mxu0 0.0
    %2418 = vmatprep.subr.mxu0 0.0
    %2419 = vmatpush1.msra.mxu0 0.0
    %2420 = vmatprep.subr.mxu0 0.0
    %2421 = vmatpush1.msra.mxu0 0.0
    %2422 = vmatprep.subr.mxu0 0.0
    %2423 = vmatpush1.msra.mxu0 0.0
    %2424 = vmatprep.subr.mxu0 0.0
    %2425 = vmatpush1.msra.mxu0 0.0
    %2426 = vmatprep.subr.mxu0 0.0
    %2427 = vmatpush1.msra.mxu0 0.0
    %2428 = vmatprep.subr.mxu0 0.0
    %2429 = vmatpush1.msra.mxu0 0.0
    %2430 = vmatprep.subr.mxu0 0.0
    %2431 = vmatpush1.msra.mxu0 0.0
    %2432 = vmatprep.subr.mxu0 0.0
    %2433 = vmatpush1.msra.mxu0 0.0
    %2434 = vmatprep.subr.mxu0 0.0
    %2435 = vmatpush1.msra.mxu0 0.0
    %2436 = vmatprep.subr.mxu0 0.0
    %2437 = vmatpush1.msra.mxu0 0.0
    %2438 = vmatprep.subr.mxu0 0.0
    %2439 = vmatpush1.msra.mxu0 0.0
    %2440 = vmatprep.subr.mxu0 0.0
    %2441 = vmatpush1.msra.mxu0 0.0
    %2442 = vmatprep.subr.mxu0 0.0
    %2443 = vmatpush1.msra.mxu0 0.0
    %2444 = vmatprep.subr.mxu0 0.0
    %2445 = vmatpush1.msra.mxu0 0.0
    %2446 = vmatprep.subr.mxu0 0.0
    %2447 = vmatpush1.msra.mxu0 0.0
    %2448 = vmatprep.subr.mxu0 0.0
    %2449 = vmatpush1.msra.mxu0 0.0
    %2450 = vmatprep.subr.mxu0 0.0
    %2451 = vmatpush1.msra.mxu0 0.0
    %2452 = vmatprep.subr.mxu0 0.0
    %2453 = vmatpush1.msra.mxu0 0.0
    %2454 = vmatprep.subr.mxu0 0.0
    %2455 = vmatpush1.msra.mxu0 0.0
    %2456 = vmatprep.subr.mxu0 0.0
    %2457 = vmatpush1.msra.mxu0 0.0
    %2458 = vmatprep.subr.mxu0 0.0
    %2459 = vmatpush1.msra.mxu0 0.0
    %2460 = vmatprep.subr.mxu0 0.0
    %2461 = vmatpush1.msra.mxu0 0.0
    %2462 = vmatprep.subr.mxu0 0.0
    %2463 = vmatpush1.msra.mxu0 0.0
    %2464 = vmatprep.subr.mxu0 0.0
    %2465 = vmatpush1.msra.mxu0 0.0
    %2466 = vmatprep.subr.mxu0 0.0
    %2467 = vmatpush1.msra.mxu0 0.0
    %2468 = vmatprep.subr.mxu0 0.0
    %2469 = vmatpush1.msra.mxu0 0.0
    %2470 = vmatprep.subr.mxu0 0.0
    %2471 = vmatpush1.msra.mxu0 0.0
    %2472 = vmatprep.subr.mxu0 0.0
    %2473 = vmatpush1.msra.mxu0 0.0
    %2474 = vmatprep.subr.mxu0 0.0
    %2475 = vmatpush1.msra.mxu0 0.0
    %2476 = vmatprep.mubr.f32.mxu0 0.0
    %v2477 = vand.u32 %v2408, 4294901760
    %v2478 = vsub.f32 %v2408, %v2477
    %v2479 = vand.u32 %v2478, 4294901760
    %v2480 = vsub.f32 %v2478, %v2479
    %v2481 = vand.u32 %v2480, 4294901760
    %2482 = vmatmul.mubr.f32.gmra.mrb[0].mxu0 %v2481
    %v2483 = vpop.f32.mrb[0].mxu0
    %v2484 = vadd.f32 %v2405, %v2483
    %v2485 = vpop.f32.mrb[0].mxu0
    %2486 = vdwg.mxu0
    %2487 = vmatprep.subr.mxu0 0.0
    %v2488 = vand.u32 %v2398, 4294901760
    %v2489 = vsub.f32 %v2398, %v2488
    %v2490 = vand.u32 %v2489, 4294901760
    %v2491 = vsub.f32 %v2489, %v2490
    %v2492 = vand.u32 %v2491, 4294901760
    %2493 = vmatpush1.msra.mxu0 %v2492
    %2494 = vmatprep.subr.mxu0 0.0
    %v2495 = vand.u32 %v2399, 4294901760
    %v2496 = vsub.f32 %v2399, %v2495
    %v2497 = vand.u32 %v2496, 4294901760
    %v2498 = vsub.f32 %v2496, %v2497
    %v2499 = vand.u32 %v2498, 4294901760
    %2500 = vmatpush1.msra.mxu0 %v2499
    %2501 = vmatprep.subr.mxu0 0.0
    %2502 = vmatpush1.msra.mxu0 0.0
    %2503 = vmatprep.subr.mxu0 0.0
    %2504 = vmatpush1.msra.mxu0 0.0
    %2505 = vmatprep.subr.mxu0 0.0
    %2506 = vmatpush1.msra.mxu0 0.0
    %2507 = vmatprep.subr.mxu0 0.0
    %2508 = vmatpush1.msra.mxu0 0.0
    %2509 = vmatprep.subr.mxu0 0.0
    %2510 = vmatpush1.msra.mxu0 0.0
    %2511 = vmatprep.subr.mxu0 0.0
    %2512 = vmatpush1.msra.mxu0 0.0
    %2513 = vmatprep.subr.mxu0 0.0
    %2514 = vmatpush1.msra.mxu0 0.0
    %2515 = vmatprep.subr.mxu0 0.0
    %2516 = vmatpush1.msra.mxu0 0.0
    %2517 = vmatprep.subr.mxu0 0.0
    %2518 = vmatpush1.msra.mxu0 0.0
    %2519 = vmatprep.subr.mxu0 0.0
    %2520 = vmatpush1.msra.mxu0 0.0
    %2521 = vmatprep.subr.mxu0 0.0
    %2522 = vmatpush1.msra.mxu0 0.0
    %2523 = vmatprep.subr.mxu0 0.0
    %2524 = vmatpush1.msra.mxu0 0.0
    %2525 = vmatprep.subr.mxu0 0.0
    %2526 = vmatpush1.msra.mxu0 0.0
    %2527 = vmatprep.subr.mxu0 0.0
    %2528 = vmatpush1.msra.mxu0 0.0
    %2529 = vmatprep.subr.mxu0 0.0
    %2530 = vmatpush1.msra.mxu0 0.0
    %2531 = vmatprep.subr.mxu0 0.0
    %2532 = vmatpush1.msra.mxu0 0.0
    %2533 = vmatprep.subr.mxu0 0.0
    %2534 = vmatpush1.msra.mxu0 0.0
    %2535 = vmatprep.subr.mxu0 0.0
    %2536 = vmatpush1.msra.mxu0 0.0
    %2537 = vmatprep.subr.mxu0 0.0
    %2538 = vmatpush1.msra.mxu0 0.0
    %2539 = vmatprep.subr.mxu0 0.0
    %2540 = vmatpush1.msra.mxu0 0.0
    %2541 = vmatprep.subr.mxu0 0.0
    %2542 = vmatpush1.msra.mxu0 0.0
    %2543 = vmatprep.subr.mxu0 0.0
    %2544 = vmatpush1.msra.mxu0 0.0
    %2545 = vmatprep.subr.mxu0 0.0
    %2546 = vmatpush1.msra.mxu0 0.0
    %2547 = vmatprep.subr.mxu0 0.0
    %2548 = vmatpush1.msra.mxu0 0.0
    %2549 = vmatprep.subr.mxu0 0.0
    %2550 = vmatpush1.msra.mxu0 0.0
    %2551 = vmatprep.subr.mxu0 0.0
    %2552 = vmatpush1.msra.mxu0 0.0
    %2553 = vmatprep.subr.mxu0 0.0
    %2554 = vmatpush1.msra.mxu0 0.0
    %2555 = vmatprep.subr.mxu0 0.0
    %2556 = vmatpush1.msra.mxu0 0.0
    %2557 = vmatprep.subr.mxu0 0.0
    %2558 = vmatpush1.msra.mxu0 0.0
    %2559 = vmatprep.subr.mxu0 0.0
    %2560 = vmatpush1.msra.mxu0 0.0
    %2561 = vmatprep.mubr.f32.mxu0 0.0
    %v2562 = vand.u32 %v2408, 4294901760
    %2563 = vmatmul.mubr.f32.gmra.mrb[0].mxu0 %v2562
    %v2564 = vpop.f32.mrb[0].mxu0
    %v2565 = vadd.f32 %v2484, %v2564
    %v2566 = vpop.f32.mrb[0].mxu0
    %2567 = vdwg.mxu0
    %2568 = vmatprep.subr.mxu0 0.0
    %v2569 = vand.u32 %v2398, 4294901760
    %v2570 = vsub.f32 %v2398, %v2569
    %2571 = vmatpush1.msra.mxu0 %v2570
    %2572 = vmatprep.subr.mxu0 0.0
    %v2573 = vand.u32 %v2399, 4294901760
    %v2574 = vsub.f32 %v2399, %v2573
    %2575 = vmatpush1.msra.mxu0 %v2574
    %2576 = vmatprep.subr.mxu0 0.0
    %2577 = vmatpush1.msra.mxu0 0.0
    %2578 = vmatprep.subr.mxu0 0.0
    %2579 = vmatpush1.msra.mxu0 0.0
    %2580 = vmatprep.subr.mxu0 0.0
    %2581 = vmatpush1.msra.mxu0 0.0
    %2582 = vmatprep.subr.mxu0 0.0
    %2583 = vmatpush1.msra.mxu0 0.0
    %2584 = vmatprep.subr.mxu0 0.0
    %2585 = vmatpush1.msra.mxu0 0.0
    %2586 = vmatprep.subr.mxu0 0.0
    %2587 = vmatpush1.msra.mxu0 0.0
    %2588 = vmatprep.subr.mxu0 0.0
    %2589 = vmatpush1.msra.mxu0 0.0
    %2590 = vmatprep.subr.mxu0 0.0
    %2591 = vmatpush1.msra.mxu0 0.0
    %2592 = vmatprep.subr.mxu0 0.0
    %2593 = vmatpush1.msra.mxu0 0.0
    %2594 = vmatprep.subr.mxu0 0.0
    %2595 = vmatpush1.msra.mxu0 0.0
    %2596 = vmatprep.subr.mxu0 0.0
    %2597 = vmatpush1.msra.mxu0 0.0
    %2598 = vmatprep.subr.mxu0 0.0
    %2599 = vmatpush1.msra.mxu0 0.0
    %2600 = vmatprep.subr.mxu0 0.0
    %2601 = vmatpush1.msra.mxu0 0.0
    %2602 = vmatprep.subr.mxu0 0.0
    %2603 = vmatpush1.msra.mxu0 0.0
    %2604 = vmatprep.subr.mxu0 0.0
    %2605 = vmatpush1.msra.mxu0 0.0
    %2606 = vmatprep.subr.mxu0 0.0
    %2607 = vmatpush1.msra.mxu0 0.0
    %2608 = vmatprep.subr.mxu0 0.0
    %2609 = vmatpush1.msra.mxu0 0.0
    %2610 = vmatprep.subr.mxu0 0.0
    %2611 = vmatpush1.msra.mxu0 0.0
    %2612 = vmatprep.subr.mxu0 0.0
    %2613 = vmatpush1.msra.mxu0 0.0
    %2614 = vmatprep.subr.mxu0 0.0
    %2615 = vmatpush1.msra.mxu0 0.0
    %2616 = vmatprep.subr.mxu0 0.0
    %2617 = vmatpush1.msra.mxu0 0.0
    %2618 = vmatprep.subr.mxu0 0.0
    %2619 = vmatpush1.msra.mxu0 0.0
    %2620 = vmatprep.subr.mxu0 0.0
    %2621 = vmatpush1.msra.mxu0 0.0
    %2622 = vmatprep.subr.mxu0 0.0
    %2623 = vmatpush1.msra.mxu0 0.0
    %2624 = vmatprep.subr.mxu0 0.0
    %2625 = vmatpush1.msra.mxu0 0.0
    %2626 = vmatprep.subr.mxu0 0.0
    %2627 = vmatpush1.msra.mxu0 0.0
    %2628 = vmatprep.subr.mxu0 0.0
    %2629 = vmatpush1.msra.mxu0 0.0
    %2630 = vmatprep.subr.mxu0 0.0
    %2631 = vmatpush1.msra.mxu0 0.0
    %2632 = vmatprep.subr.mxu0 0.0
    %2633 = vmatpush1.msra.mxu0 0.0
    %2634 = vmatprep.subr.mxu0 0.0
    %2635 = vmatpush1.msra.mxu0 0.0
    %2636 = vmatprep.mubr.f32.mxu0 0.0
    %v2637 = vand.u32 %v2408, 4294901760
    %v2638 = vsub.f32 %v2408, %v2637
    %2639 = vmatmul.mubr.f32.gmra.mrb[0].mxu0 %v2638
    %v2640 = vpop.f32.mrb[0].mxu0
    %v2641 = vadd.f32 %v2565, %v2640
    %v2642 = vpop.f32.mrb[0].mxu0
    %2643 = vdwg.mxu0
    %2644 = vmatprep.subr.mxu0 0.0
    %v2645 = vand.u32 %v2398, 4294901760
    %2646 = vmatpush1.msra.mxu0 %v2645
    %2647 = vmatprep.subr.mxu0 0.0
    %v2648 = vand.u32 %v2399, 4294901760
    %2649 = vmatpush1.msra.mxu0 %v2648
    %2650 = vmatprep.subr.mxu0 0.0
    %2651 = vmatpush1.msra.mxu0 0.0
    %2652 = vmatprep.subr.mxu0 0.0
    %2653 = vmatpush1.msra.mxu0 0.0
    %2654 = vmatprep.subr.mxu0 0.0
    %2655 = vmatpush1.msra.mxu0 0.0
    %2656 = vmatprep.subr.mxu0 0.0
    %2657 = vmatpush1.msra.mxu0 0.0
    %2658 = vmatprep.subr.mxu0 0.0
    %2659 = vmatpush1.msra.mxu0 0.0
    %2660 = vmatprep.subr.mxu0 0.0
    %2661 = vmatpush1.msra.mxu0 0.0
    %2662 = vmatprep.subr.mxu0 0.0
    %2663 = vmatpush1.msra.mxu0 0.0
    %2664 = vmatprep.subr.mxu0 0.0
    %2665 = vmatpush1.msra.mxu0 0.0
    %2666 = vmatprep.subr.mxu0 0.0
    %2667 = vmatpush1.msra.mxu0 0.0
    %2668 = vmatprep.subr.mxu0 0.0
    %2669 = vmatpush1.msra.mxu0 0.0
    %2670 = vmatprep.subr.mxu0 0.0
    %2671 = vmatpush1.msra.mxu0 0.0
    %2672 = vmatprep.subr.mxu0 0.0
    %2673 = vmatpush1.msra.mxu0 0.0
    %2674 = vmatprep.subr.mxu0 0.0
    %2675 = vmatpush1.msra.mxu0 0.0
    %2676 = vmatprep.subr.mxu0 0.0
    %2677 = vmatpush1.msra.mxu0 0.0
    %2678 = vmatprep.subr.mxu0 0.0
    %2679 = vmatpush1.msra.mxu0 0.0
    %2680 = vmatprep.subr.mxu0 0.0
    %2681 = vmatpush1.msra.mxu0 0.0
    %2682 = vmatprep.subr.mxu0 0.0
    %2683 = vmatpush1.msra.mxu0 0.0
    %2684 = vmatprep.subr.mxu0 0.0
    %2685 = vmatpush1.msra.mxu0 0.0
    %2686 = vmatprep.subr.mxu0 0.0
    %2687 = vmatpush1.msra.mxu0 0.0
    %2688 = vmatprep.subr.mxu0 0.0
    %2689 = vmatpush1.msra.mxu0 0.0
    %2690 = vmatprep.subr.mxu0 0.0
    %2691 = vmatpush1.msra.mxu0 0.0
    %2692 = vmatprep.subr.mxu0 0.0
    %2693 = vmatpush1.msra.mxu0 0.0
    %2694 = vmatprep.subr.mxu0 0.0
    %2695 = vmatpush1.msra.mxu0 0.0
    %2696 = vmatprep.subr.mxu0 0.0
    %2697 = vmatpush1.msra.mxu0 0.0
    %2698 = vmatprep.subr.mxu0 0.0
    %2699 = vmatpush1.msra.mxu0 0.0
    %2700 = vmatprep.subr.mxu0 0.0
    %2701 = vmatpush1.msra.mxu0 0.0
    %2702 = vmatprep.subr.mxu0 0.0
    %2703 = vmatpush1.msra.mxu0 0.0
    %2704 = vmatprep.subr.mxu0 0.0
    %2705 = vmatpush1.msra.mxu0 0.0
    %2706 = vmatprep.subr.mxu0 0.0
    %2707 = vmatpush1.msra.mxu0 0.0
    %2708 = vmatprep.subr.mxu0 0.0
    %2709 = vmatpush1.msra.mxu0 0.0
    %2710 = vmatprep.mubr.f32.mxu0 0.0
    %v2711 = vand.u32 %v2408, 4294901760
    %v2712 = vsub.f32 %v2408, %v2711
    %v2713 = vand.u32 %v2712, 4294901760
    %2714 = vmatmul.mubr.f32.gmra.mrb[0].mxu0 %v2713
    %v2715 = vpop.f32.mrb[0].mxu0
    %v2716 = vadd.f32 %v2641, %v2715
    %v2717 = vpop.f32.mrb[0].mxu0
    %2718 = vdwg.mxu0
    %2719 = vmatprep.subr.mxu0 0.0
    %v2720 = vand.u32 %v2398, 4294901760
    %v2721 = vsub.f32 %v2398, %v2720
    %v2722 = vand.u32 %v2721, 4294901760
    %2723 = vmatpush1.msra.mxu0 %v2722
    %2724 = vmatprep.subr.mxu0 0.0
    %v2725 = vand.u32 %v2399, 4294901760
    %v2726 = vsub.f32 %v2399, %v2725
    %v2727 = vand.u32 %v2726, 4294901760
    %2728 = vmatpush1.msra.mxu0 %v2727
    %2729 = vmatprep.subr.mxu0 0.0
    %2730 = vmatpush1.msra.mxu0 0.0
    %2731 = vmatprep.subr.mxu0 0.0
    %2732 = vmatpush1.msra.mxu0 0.0
    %2733 = vmatprep.subr.mxu0 0.0
    %2734 = vmatpush1.msra.mxu0 0.0
    %2735 = vmatprep.subr.mxu0 0.0
    %2736 = vmatpush1.msra.mxu0 0.0
    %2737 = vmatprep.subr.mxu0 0.0
    %2738 = vmatpush1.msra.mxu0 0.0
    %2739 = vmatprep.subr.mxu0 0.0
    %2740 = vmatpush1.msra.mxu0 0.0
    %2741 = vmatprep.subr.mxu0 0.0
    %2742 = vmatpush1.msra.mxu0 0.0
    %2743 = vmatprep.subr.mxu0 0.0
    %2744 = vmatpush1.msra.mxu0 0.0
    %2745 = vmatprep.subr.mxu0 0.0
    %2746 = vmatpush1.msra.mxu0 0.0
    %2747 = vmatprep.subr.mxu0 0.0
    %2748 = vmatpush1.msra.mxu0 0.0
    %2749 = vmatprep.subr.mxu0 0.0
    %2750 = vmatpush1.msra.mxu0 0.0
    %2751 = vmatprep.subr.mxu0 0.0
    %2752 = vmatpush1.msra.mxu0 0.0
    %2753 = vmatprep.subr.mxu0 0.0
    %2754 = vmatpush1.msra.mxu0 0.0
    %2755 = vmatprep.subr.mxu0 0.0
    %2756 = vmatpush1.msra.mxu0 0.0
    %2757 = vmatprep.subr.mxu0 0.0
    %2758 = vmatpush1.msra.mxu0 0.0
    %2759 = vmatprep.subr.mxu0 0.0
    %2760 = vmatpush1.msra.mxu0 0.0
    %2761 = vmatprep.subr.mxu0 0.0
    %2762 = vmatpush1.msra.mxu0 0.0
    %2763 = vmatprep.subr.mxu0 0.0
    %2764 = vmatpush1.msra.mxu0 0.0
    %2765 = vmatprep.subr.mxu0 0.0
    %2766 = vmatpush1.msra.mxu0 0.0
    %2767 = vmatprep.subr.mxu0 0.0
    %2768 = vmatpush1.msra.mxu0 0.0
    %2769 = vmatprep.subr.mxu0 0.0
    %2770 = vmatpush1.msra.mxu0 0.0
    %2771 = vmatprep.subr.mxu0 0.0
    %2772 = vmatpush1.msra.mxu0 0.0
    %2773 = vmatprep.subr.mxu0 0.0
    %2774 = vmatpush1.msra.mxu0 0.0
    %2775 = vmatprep.subr.mxu0 0.0
    %2776 = vmatpush1.msra.mxu0 0.0
    %2777 = vmatprep.subr.mxu0 0.0
    %2778 = vmatpush1.msra.mxu0 0.0
    %2779 = vmatprep.subr.mxu0 0.0
    %2780 = vmatpush1.msra.mxu0 0.0
    %2781 = vmatprep.subr.mxu0 0.0
    %2782 = vmatpush1.msra.mxu0 0.0
    %2783 = vmatprep.subr.mxu0 0.0
    %2784 = vmatpush1.msra.mxu0 0.0
    %2785 = vmatprep.subr.mxu0 0.0
    %2786 = vmatpush1.msra.mxu0 0.0
    %2787 = vmatprep.subr.mxu0 0.0
    %2788 = vmatpush1.msra.mxu0 0.0
    %2789 = vmatprep.mubr.f32.mxu0 0.0
    %v2790 = vand.u32 %v2408, 4294901760
    %2791 = vmatmul.mubr.f32.gmra.mrb[0].mxu0 %v2790
    %v2792 = vpop.f32.mrb[0].mxu0
    %v2793 = vadd.f32 %v2716, %v2792
    %v2794 = vpop.f32.mrb[0].mxu0
    %2795 = vdwg.mxu0
    %2796 = vmatprep.subr.mxu0 0.0
    %v2797 = vand.u32 %v2398, 4294901760
    %2798 = vmatpush1.msra.mxu0 %v2797
    %2799 = vmatprep.subr.mxu0 0.0
    %v2800 = vand.u32 %v2399, 4294901760
    %2801 = vmatpush1.msra.mxu0 %v2800
    %2802 = vmatprep.subr.mxu0 0.0
    %2803 = vmatpush1.msra.mxu0 0.0
    %2804 = vmatprep.subr.mxu0 0.0
    %2805 = vmatpush1.msra.mxu0 0.0
    %2806 = vmatprep.subr.mxu0 0.0
    %2807 = vmatpush1.msra.mxu0 0.0
    %2808 = vmatprep.subr.mxu0 0.0
    %2809 = vmatpush1.msra.mxu0 0.0
    %2810 = vmatprep.subr.mxu0 0.0
    %2811 = vmatpush1.msra.mxu0 0.0
    %2812 = vmatprep.subr.mxu0 0.0
    %2813 = vmatpush1.msra.mxu0 0.0
    %2814 = vmatprep.subr.mxu0 0.0
    %2815 = vmatpush1.msra.mxu0 0.0
    %2816 = vmatprep.subr.mxu0 0.0
    %2817 = vmatpush1.msra.mxu0 0.0
    %2818 = vmatprep.subr.mxu0 0.0
    %2819 = vmatpush1.msra.mxu0 0.0
    %2820 = vmatprep.subr.mxu0 0.0
    %2821 = vmatpush1.msra.mxu0 0.0
    %2822 = vmatprep.subr.mxu0 0.0
    %2823 = vmatpush1.msra.mxu0 0.0
    %2824 = vmatprep.subr.mxu0 0.0
    %2825 = vmatpush1.msra.mxu0 0.0
    %2826 = vmatprep.subr.mxu0 0.0
    %2827 = vmatpush1.msra.mxu0 0.0
    %2828 = vmatprep.subr.mxu0 0.0
    %2829 = vmatpush1.msra.mxu0 0.0
    %2830 = vmatprep.subr.mxu0 0.0
    %2831 = vmatpush1.msra.mxu0 0.0
    %2832 = vmatprep.subr.mxu0 0.0
    %2833 = vmatpush1.msra.mxu0 0.0
    %2834 = vmatprep.subr.mxu0 0.0
    %2835 = vmatpush1.msra.mxu0 0.0
    %2836 = vmatprep.subr.mxu0 0.0
    %2837 = vmatpush1.msra.mxu0 0.0
    %2838 = vmatprep.subr.mxu0 0.0
    %2839 = vmatpush1.msra.mxu0 0.0
    %2840 = vmatprep.subr.mxu0 0.0
    %2841 = vmatpush1.msra.mxu0 0.0
    %2842 = vmatprep.subr.mxu0 0.0
    %2843 = vmatpush1.msra.mxu0 0.0
    %2844 = vmatprep.subr.mxu0 0.0
    %2845 = vmatpush1.msra.mxu0 0.0
    %2846 = vmatprep.subr.mxu0 0.0
    %2847 = vmatpush1.msra.mxu0 0.0
    %2848 = vmatprep.subr.mxu0 0.0
    %2849 = vmatpush1.msra.mxu0 0.0
    %2850 = vmatprep.subr.mxu0 0.0
    %2851 = vmatpush1.msra.mxu0 0.0
    %2852 = vmatprep.subr.mxu0 0.0
    %2853 = vmatpush1.msra.mxu0 0.0
    %2854 = vmatprep.subr.mxu0 0.0
    %2855 = vmatpush1.msra.mxu0 0.0
    %2856 = vmatprep.subr.mxu0 0.0
    %2857 = vmatpush1.msra.mxu0 0.0
    %2858 = vmatprep.subr.mxu0 0.0
    %2859 = vmatpush1.msra.mxu0 0.0
    %2860 = vmatprep.subr.mxu0 0.0
    %2861 = vmatpush1.msra.mxu0 0.0
    %2862 = vmatprep.mubr.f32.mxu0 0.0
    %v2863 = vand.u32 %v2408, 4294901760
    %2864 = vmatmul.mubr.f32.gmra.mrb[0].mxu0 %v2863
    %v2865 = vpop.f32.mrb[0].mxu0
    %v2866 = vadd.f32 %v2793, %v2865
    %v2867 = vpop.f32.mrb[0].mxu0
    %2868 = vdwg.mxu0
    %2869 = vst.msk [vmem:[#allocation11] sm:$0xff] %vm541, %v2866
    // Predicated region
    $region42: #{tpu_custom_call.1} parent=1 // pred_check
      _
    $region43: #{tpu_custom_call.1} parent=1 // pred_check_branch
      %2871 = sbr.rel (0) target = $region45
    $region44: #{tpu_custom_call.1} parent=1 // pred_region
      %s2873 = ssub.s32 128, 128
      %2874 = vsyncadd [#allocation4], %s2873
      %s2876 = sshll.u32 [#allocation10], 4
      %s2877 = int_to_ptr.vmem [resolvable:$true] %s2876
      %2879 = dma.vmem_to_hbm [thread:$0]  %s2877, 128, %s6, [#allocation4]
    $region45: #{tpu_custom_call.1} parent=1 // pred_fallthru
      _
    // Predicated region
    $region46: #{tpu_custom_call.1} parent=1 // pred_check
      _
    $region47: #{tpu_custom_call.1} parent=1 // pred_check_branch
      %2881 = sbr.rel (0) target = $region49
    $region48: #{tpu_custom_call.1} parent=1 // pred_region
      %s2883 = ssub.s32 128, 128
      %2884 = vsyncadd [#allocation12], %s2883
      %s2886 = sshll.u32 [#allocation11], 4
      %s2887 = int_to_ptr.vmem [resolvable:$true] %s2886
      %2889 = dma.vmem_to_hbm [thread:$0]  %s2887, 128, %s7, [#allocation12]
    $region49: #{tpu_custom_call.1} parent=1 // pred_fallthru
      _
    // Predicated region
    $region50: #{tpu_custom_call.1} parent=1 // pred_check
      _
    $region51: #{tpu_custom_call.1} parent=1 // pred_check_branch
      %2891 = sbr.rel (0) target = $region53
    $region52: #{tpu_custom_call.1} parent=1 // pred_region
      %2892 = dma.done [#allocation4], 128
    $region53: #{tpu_custom_call.1} parent=1 // pred_fallthru
      _
    // Predicated region
    $region54: #{tpu_custom_call.1} parent=1 // pred_check
      _
    $region55: #{tpu_custom_call.1} parent=1 // pred_check_branch
      %2894 = sbr.rel (0) target = $region57
    $region56: #{tpu_custom_call.1} parent=1 // pred_region
      %2895 = dma.done [#allocation12], 128
    $region57: #{tpu_custom_call.1} parent=1 // pred_fallthru
      _
    %2896 = vsyncpa [#allocation3], 1
    %2897 = vsyncpa [#allocation6], 1
    %2898 = vsyncpa [#allocation9], 1
    %2899 = vsyncpa [#allocation4], 1
    %2900 = vsyncpa [#allocation12], 1

</llo_original>
